<compile_context>
chip_gen: v7x
topology: tpu7x:2x2x1
jax: 0.10.0
libtpu: 0.0.40
codegen_flags: <defaults>
</compile_context>

<pallas_src>
import functools

import jax
import jax.numpy as jnp
from jax.experimental import pallas as pl
from jax.experimental.pallas import tpu as pltpu


def _round_up(x, m):
    return ((x + m - 1) // m) * m


def match_predictor_kernel(x_ref, w1_ref, b1_ref, w2_ref, b2_ref, w3_ref, b3_ref,
                           wf_ref, bf_ref, out_ref):
    n_slots, tb, k_in = x_ref.shape          # (10, TB, 2*(E+1)); TB % 8 == 0
    out_pad = out_ref.shape[1]               # 128-lane padded output width

    # Fold champion-slot dim into rows: layout-preserving collapse (TB % 8 == 0).
    x = x_ref[...].reshape(n_slots * tb, k_in)                       # [10*TB, 2*(E+1)]

    # Block-diagonal team MLP: 3 matmuls total for all 10 champion slots of both teams.
    h = jnp.maximum(
        jnp.dot(x, w1_ref[...], preferred_element_type=jnp.float32) + b1_ref[...], 0.0)
    h = jnp.maximum(
        jnp.dot(h, w2_ref[...], preferred_element_type=jnp.float32) + b2_ref[...], 0.0)
    h = jnp.maximum(
        jnp.dot(h, w3_ref[...], preferred_element_type=jnp.float32) + b3_ref[...], 0.0)
    # h: [10*TB, 20]; team1 slots (c<5) valid in lanes 0:10, team2 slots in lanes 10:20.

    # Final fc as MXU accumulation over champion slots (no lane concatenation).
    # wf_ref[c] is [20, out_pad] with zeros in the other team's 10 rows, so the
    # "garbage" lanes of h contribute exactly zero.
    acc = jnp.broadcast_to(bf_ref[...], (tb, out_pad))
    for c in range(n_slots):
        acc = acc + jnp.dot(h[c * tb:(c + 1) * tb, :], wf_ref[c],
                            preferred_element_type=jnp.float32)
    out_ref[...] = acc


def init_params(key, num_champions, embedding_dim, output_dim):
    ks = jax.random.split(key, 8)

    def linear(k, fan_in, fan_out):
        kw, kb = jax.random.split(k)
        bound = 1.0 / float(fan_in) ** 0.5
        w = jax.random.uniform(kw, (fan_in, fan_out), jnp.float32, -bound, bound)
        b = jax.random.uniform(kb, (1, fan_out), jnp.float32, -bound, bound)
        return w, b

    p = {}
    p["embedding"] = jax.random.normal(ks[0], (num_champions, embedding_dim), jnp.float32)
    p["t1_w1"], p["t1_b1"] = linear(ks[1], embedding_dim + 1, 50)
    p["t1_w2"], p["t1_b2"] = linear(ks[2], 50, 25)
    p["t1_w3"], p["t1_b3"] = linear(ks[3], 25, 10)
    p["t2_w1"], p["t2_b1"] = linear(ks[4], embedding_dim + 1, 50)
    p["t2_w2"], p["t2_b2"] = linear(ks[5], 50, 25)
    p["t2_w3"], p["t2_b3"] = linear(ks[6], 25, 10)
    p["wf"], p["bf"] = linear(ks[7], 10 * 10, output_dim)
    return p


def match_predictor_forward(features, params, output_dim, *, max_batch_tile=256):
    """features: [B, 2 + ... + 10]; cols 0,1 = glicko scores, last 10 cols = champion ids."""
    B = features.shape[0]
    E = params["embedding"].shape[1]
    k_in = 2 * (E + 1)
    out_pad = _round_up(max(output_dim, 1), 128)     # lane-dense output store

    glicko1 = features[:, 0:1]                       # [B, 1]
    glicko2 = features[:, 1:2]                       # [B, 1]
    champ_idx = features[:, -10:].astype(jnp.int32)  # [B, 10]
    emb = jnp.take(params["embedding"], champ_idx, axis=0)          # [B, 10, E]

    # Build slot-major inputs [10, B, 2*(E+1)]:
    #   team1 slots carry [emb, glicko1] in lanes [0, E+1), zeros elsewhere;
    #   team2 slots carry [emb, glicko2] in lanes [E+1, 2*(E+1)), zeros elsewhere.
    zpad = jnp.zeros((B, 5, E + 1), jnp.float32)
    g1 = jnp.broadcast_to(glicko1[:, None, :], (B, 5, 1))
    g2 = jnp.broadcast_to(glicko2[:, None, :], (B, 5, 1))
    t1 = jnp.concatenate([emb[:, :5, :], g1, zpad], axis=-1)        # [B, 5, k_in]
    t2 = jnp.concatenate([zpad, emb[:, 5:, :], g2], axis=-1)        # [B, 5, k_in]
    x_all = jnp.concatenate([t1, t2], axis=1).transpose(1, 0, 2)    # [10, B, k_in]

    # Batch padding / tiling (TB multiple of 8 for aligned folds and slices).
    b8 = _round_up(B, 8)
    tb = min(b8, max_batch_tile)
    b_pad = _round_up(b8, tb)
    x_all = jnp.pad(x_all, ((0, 0), (0, b_pad - B), (0, 0)))

    # Block-diagonal team weights: one MLP for both teams.
    def blkdiag(a, b):
        top = jnp.concatenate([a, jnp.zeros((a.shape[0], b.shape[1]), a.dtype)], axis=1)
        bot = jnp.concatenate([jnp.zeros((b.shape[0], a.shape[1]), b.dtype), b], axis=1)
        return jnp.concatenate([top, bot], axis=0)

    w1 = blkdiag(params["t1_w1"], params["t2_w1"])                        # [2(E+1), 100]
    b1 = jnp.concatenate([params["t1_b1"], params["t2_b1"]], axis=1)      # [1, 100]
    w2 = blkdiag(params["t1_w2"], params["t2_w2"])                        # [100, 50]
    b2 = jnp.concatenate([params["t1_b2"], params["t2_b2"]], axis=1)      # [1, 50]
    w3 = blkdiag(params["t1_w3"], params["t2_w3"])                        # [50, 20]
    b3 = jnp.concatenate([params["t1_b3"], params["t2_b3"]], axis=1)      # [1, 20]

    # Final fc weights, per champion slot, lane-padded to out_pad and zero-expanded so
    # team1 slots read h lanes 0:10 and team2 slots read h lanes 10:20.
    # Slot order stays: team1 champ0..4 then team2 champ0..4 (matches wf row layout).
    wf = jnp.zeros((100, out_pad), jnp.float32).at[:, :output_dim].set(params["wf"])
    wf_r = wf.reshape(10, 10, out_pad)
    z10 = jnp.zeros((5, 10, out_pad), jnp.float32)
    wf_exp = jnp.concatenate(
        [jnp.concatenate([wf_r[:5], z10], axis=1),      # team1 slots: rows 0:10 active
         jnp.concatenate([z10, wf_r[5:]], axis=1)],     # team2 slots: rows 10:20 active
        axis=0)                                         # [10, 20, out_pad]
    bf = jnp.zeros((1, out_pad), jnp.float32).at[:, :output_dim].set(params["bf"])

    grid = (b_pad // tb,)

    def full_spec(shape):
        return pl.BlockSpec(shape, lambda i, _n=len(shape): (0,) * _n)

    flops = 2 * 10 * b_pad * (k_in * 100 + 100 * 50 + 50 * 20 + 20 * out_pad)
    bytes_accessed = 4 * (x_all.size + w1.size + b1.size + w2.size + b2.size
                          + w3.size + b3.size + wf_exp.size + bf.size + b_pad * out_pad)

    out = pl.pallas_call(
        match_predictor_kernel,
        out_shape=jax.ShapeDtypeStruct((b_pad, out_pad), jnp.float32),
        grid_spec=pltpu.PrefetchScalarGridSpec(
            num_scalar_prefetch=0,
            grid=grid,
            in_specs=[
                pl.BlockSpec((10, tb, k_in), lambda i: (0, i, 0)),   # batch-tiled input
                full_spec(w1.shape), full_spec(b1.shape),
                full_spec(w2.shape), full_spec(b2.shape),
                full_spec(w3.shape), full_spec(b3.shape),
                full_spec(wf_exp.shape), full_spec(bf.shape),
            ],
            out_specs=pl.BlockSpec((tb, out_pad), lambda i: (i, 0)),
        ),
        compiler_params=pltpu.CompilerParams(
            dimension_semantics=("parallel",)),
        cost_estimate=pl.CostEstimate(flops=flops, transcendentals=0,
                                      bytes_accessed=bytes_accessed),
    )(x_all, w1, b1, w2, b2, w3, b3, wf_exp, bf)

    return out[:B, :output_dim]


def reference_forward(features, p):
    """Pure-JAX mirror of the PyTorch forward for verification."""
    glicko1 = features[:, 0:1]
    glicko2 = features[:, 1:2]
    idx = features[:, -10:].astype(jnp.int32)
    outs = []
    for team_idx, g, pre in ((idx[:, :5], glicko1, "t1"), (idx[:, 5:], glicko2, "t2")):
        for i in range(5):
            e = p["embedding"][team_idx[:, i]]
            x = jnp.concatenate([e, g], axis=1)
            x = jax.nn.relu(x @ p[pre + "_w1"] + p[pre + "_b1"])
            x = jax.nn.relu(x @ p[pre + "_w2"] + p[pre + "_b2"])
            x = jax.nn.relu(x @ p[pre + "_w3"] + p[pre + "_b3"])
            outs.append(x)
    cat = jnp.concatenate(outs, axis=1)
    return cat @ p["wf"] + p["bf"]


if __name__ == "__main__":
    B = 4
    num_champions = 16
    embedding_dim = 8
    output_dim = 2

    key = jax.random.PRNGKey(0)
    k_params, k_glicko, k_idx = jax.random.split(key, 3)

    params = init_params(k_params, num_champions, embedding_dim, output_dim)

    glickos = jax.random.uniform(k_glicko, (B, 2), jnp.float32, 0.5, 2.5)
    champ_ids = jax.random.randint(k_idx, (B, 10), 0, num_champions).astype(jnp.float32)
    features = jnp.concatenate([glickos, champ_ids], axis=1)   # [B, 12]

    fwd = jax.jit(match_predictor_forward, static_argnums=2)
    out = jax.block_until_ready(fwd(features, params, output_dim))
    ref = jax.block_until_ready(reference_forward(features, params))

    assert out.shape == (B, output_dim), out.shape
    assert jnp.allclose(out, ref, atol=1e-4, rtol=1e-4), (out, ref)
    print("KERNEL_OK")
</pallas_src>

<mosaic_0001>
module attributes {stable_mosaic.version = 11 : i64} {
  func.func @match_predictor_kernel(%arg0: i32, %arg1: memref<10x8x18xf32, #tpu.memory_space<vmem>>, %arg2: memref<18x100xf32, #tpu.memory_space<vmem>>, %arg3: memref<1x100xf32, #tpu.memory_space<vmem>>, %arg4: memref<100x50xf32, #tpu.memory_space<vmem>>, %arg5: memref<1x50xf32, #tpu.memory_space<vmem>>, %arg6: memref<50x20xf32, #tpu.memory_space<vmem>>, %arg7: memref<1x20xf32, #tpu.memory_space<vmem>>, %arg8: memref<10x20x128xf32, #tpu.memory_space<vmem>>, %arg9: memref<1x128xf32, #tpu.memory_space<vmem>>, %arg10: memref<8x128xf32, #tpu.memory_space<vmem>>) attributes {dimension_semantics = [#tpu.dimension_semantics<parallel>], iteration_bounds = array<i64: 1>, scalar_prefetch = 0 : i64, scratch_operands = 0 : i64, tpu.core_type = #tpu.core_type<tc>, window_params = [{transform_indices = @transform_0, window_bounds = array<i64: 10, 8, 18>}, {pipeline_mode = #tpu.pipeline_mode<synchronous>, transform_indices = @transform_1, window_bounds = array<i64: 18, 100>}, {pipeline_mode = #tpu.pipeline_mode<synchronous>, transform_indices = @transform_2, window_bounds = array<i64: 1, 100>}, {pipeline_mode = #tpu.pipeline_mode<synchronous>, transform_indices = @transform_3, window_bounds = array<i64: 100, 50>}, {pipeline_mode = #tpu.pipeline_mode<synchronous>, transform_indices = @transform_4, window_bounds = array<i64: 1, 50>}, {pipeline_mode = #tpu.pipeline_mode<synchronous>, transform_indices = @transform_5, window_bounds = array<i64: 50, 20>}, {pipeline_mode = #tpu.pipeline_mode<synchronous>, transform_indices = @transform_6, window_bounds = array<i64: 1, 20>}, {pipeline_mode = #tpu.pipeline_mode<synchronous>, transform_indices = @transform_7, window_bounds = array<i64: 10, 20, 128>}, {pipeline_mode = #tpu.pipeline_mode<synchronous>, transform_indices = @transform_8, window_bounds = array<i64: 1, 128>}, {transform_indices = @transform_9, window_bounds = array<i64: 8, 128>}]} {
    %c0 = arith.constant 0 : index
    %c0_0 = arith.constant 0 : index
    %c0_1 = arith.constant 0 : index
    %0 = vector.load %arg1[%c0, %c0_0, %c0_1] : memref<10x8x18xf32, #tpu.memory_space<vmem>>, vector<10x8x18xf32>
    %1 = vector.shape_cast %0 : vector<10x8x18xf32> to vector<80x18xf32>
    %c0_2 = arith.constant 0 : index
    %c0_3 = arith.constant 0 : index
    %2 = vector.load %arg2[%c0_2, %c0_3] : memref<18x100xf32, #tpu.memory_space<vmem>>, vector<18x100xf32>
    %cst = arith.constant dense<0.000000e+00> : vector<80x100xf32>
    %3 = tpu.matmul %1, %2, %cst {dimension_numbers = #tpu.dot_dimension_numbers<[1], [0], [0], [1], [0, 0, 1, 1], [], []>} : vector<80x18xf32>, vector<18x100xf32>, vector<80x100xf32> -> vector<80x100xf32>
    %c0_4 = arith.constant 0 : index
    %c0_5 = arith.constant 0 : index
    %4 = vector.load %arg3[%c0_4, %c0_5] : memref<1x100xf32, #tpu.memory_space<vmem>>, vector<1x100xf32>
    %5 = vector.broadcast %4 : vector<1x100xf32> to vector<80x100xf32>
    %6 = arith.addf %3, %5 : vector<80x100xf32>
    %cst_6 = arith.constant 0.000000e+00 : f32
    %7 = vector.broadcast %cst_6 : f32 to vector<80x100xf32>
    %8 = arith.maximumf %6, %7 : vector<80x100xf32>
    %c0_7 = arith.constant 0 : index
    %c0_8 = arith.constant 0 : index
    %9 = vector.load %arg4[%c0_7, %c0_8] : memref<100x50xf32, #tpu.memory_space<vmem>>, vector<100x50xf32>
    %cst_9 = arith.constant dense<0.000000e+00> : vector<80x50xf32>
    %10 = tpu.matmul %8, %9, %cst_9 {dimension_numbers = #tpu.dot_dimension_numbers<[1], [0], [0], [1], [0, 0, 1, 1], [], []>} : vector<80x100xf32>, vector<100x50xf32>, vector<80x50xf32> -> vector<80x50xf32>
    %c0_10 = arith.constant 0 : index
    %c0_11 = arith.constant 0 : index
    %11 = vector.load %arg5[%c0_10, %c0_11] : memref<1x50xf32, #tpu.memory_space<vmem>>, vector<1x50xf32>
    %12 = vector.broadcast %11 : vector<1x50xf32> to vector<80x50xf32>
    %13 = arith.addf %10, %12 : vector<80x50xf32>
    %cst_12 = arith.constant 0.000000e+00 : f32
    %14 = vector.broadcast %cst_12 : f32 to vector<80x50xf32>
    %15 = arith.maximumf %13, %14 : vector<80x50xf32>
    %c0_13 = arith.constant 0 : index
    %c0_14 = arith.constant 0 : index
    %16 = vector.load %arg6[%c0_13, %c0_14] : memref<50x20xf32, #tpu.memory_space<vmem>>, vector<50x20xf32>
    %cst_15 = arith.constant dense<0.000000e+00> : vector<80x20xf32>
    %17 = tpu.matmul %15, %16, %cst_15 {dimension_numbers = #tpu.dot_dimension_numbers<[1], [0], [0], [1], [0, 0, 1, 1], [], []>} : vector<80x50xf32>, vector<50x20xf32>, vector<80x20xf32> -> vector<80x20xf32>
    %c0_16 = arith.constant 0 : index
    %c0_17 = arith.constant 0 : index
    %18 = vector.load %arg7[%c0_16, %c0_17] : memref<1x20xf32, #tpu.memory_space<vmem>>, vector<1x20xf32>
    %19 = vector.broadcast %18 : vector<1x20xf32> to vector<80x20xf32>
    %20 = arith.addf %17, %19 : vector<80x20xf32>
    %cst_18 = arith.constant 0.000000e+00 : f32
    %21 = vector.broadcast %cst_18 : f32 to vector<80x20xf32>
    %22 = arith.maximumf %20, %21 : vector<80x20xf32>
    %c0_19 = arith.constant 0 : index
    %c0_20 = arith.constant 0 : index
    %23 = vector.load %arg9[%c0_19, %c0_20] : memref<1x128xf32, #tpu.memory_space<vmem>>, vector<1x128xf32>
    %24 = vector.shape_cast %23 : vector<1x128xf32> to vector<1x128xf32>
    %25 = vector.broadcast %24 : vector<1x128xf32> to vector<8x128xf32>
    %26 = vector.extract_strided_slice %22 {offsets = [0, 0], sizes = [8, 20], strides = [1, 1]} : vector<80x20xf32> to vector<8x20xf32>
    %c0_21 = arith.constant 0 : index
    %c0_22 = arith.constant 0 : index
    %c0_23 = arith.constant 0 : index
    %27 = vector.load %arg8[%c0_21, %c0_22, %c0_23] : memref<10x20x128xf32, #tpu.memory_space<vmem>>, vector<1x20x128xf32>
    %28 = vector.shape_cast %27 : vector<1x20x128xf32> to vector<20x128xf32>
    %cst_24 = arith.constant dense<0.000000e+00> : vector<8x128xf32>
    %29 = tpu.matmul %26, %28, %cst_24 {dimension_numbers = #tpu.dot_dimension_numbers<[1], [0], [0], [1], [0, 0, 1, 1], [], []>} : vector<8x20xf32>, vector<20x128xf32>, vector<8x128xf32> -> vector<8x128xf32>
    %30 = arith.addf %25, %29 : vector<8x128xf32>
    %31 = vector.extract_strided_slice %22 {offsets = [8, 0], sizes = [8, 20], strides = [1, 1]} : vector<80x20xf32> to vector<8x20xf32>
    %c1 = arith.constant 1 : index
    %c0_25 = arith.constant 0 : index
    %c0_26 = arith.constant 0 : index
    %32 = vector.load %arg8[%c1, %c0_25, %c0_26] : memref<10x20x128xf32, #tpu.memory_space<vmem>>, vector<1x20x128xf32>
    %33 = vector.shape_cast %32 : vector<1x20x128xf32> to vector<20x128xf32>
    %cst_27 = arith.constant dense<0.000000e+00> : vector<8x128xf32>
    %34 = tpu.matmul %31, %33, %cst_27 {dimension_numbers = #tpu.dot_dimension_numbers<[1], [0], [0], [1], [0, 0, 1, 1], [], []>} : vector<8x20xf32>, vector<20x128xf32>, vector<8x128xf32> -> vector<8x128xf32>
    %35 = arith.addf %30, %34 : vector<8x128xf32>
    %36 = vector.extract_strided_slice %22 {offsets = [16, 0], sizes = [8, 20], strides = [1, 1]} : vector<80x20xf32> to vector<8x20xf32>
    %c2 = arith.constant 2 : index
    %c0_28 = arith.constant 0 : index
    %c0_29 = arith.constant 0 : index
    %37 = vector.load %arg8[%c2, %c0_28, %c0_29] : memref<10x20x128xf32, #tpu.memory_space<vmem>>, vector<1x20x128xf32>
    %38 = vector.shape_cast %37 : vector<1x20x128xf32> to vector<20x128xf32>
    %cst_30 = arith.constant dense<0.000000e+00> : vector<8x128xf32>
    %39 = tpu.matmul %36, %38, %cst_30 {dimension_numbers = #tpu.dot_dimension_numbers<[1], [0], [0], [1], [0, 0, 1, 1], [], []>} : vector<8x20xf32>, vector<20x128xf32>, vector<8x128xf32> -> vector<8x128xf32>
    %40 = arith.addf %35, %39 : vector<8x128xf32>
    %41 = vector.extract_strided_slice %22 {offsets = [24, 0], sizes = [8, 20], strides = [1, 1]} : vector<80x20xf32> to vector<8x20xf32>
    %c3 = arith.constant 3 : index
    %c0_31 = arith.constant 0 : index
    %c0_32 = arith.constant 0 : index
    %42 = vector.load %arg8[%c3, %c0_31, %c0_32] : memref<10x20x128xf32, #tpu.memory_space<vmem>>, vector<1x20x128xf32>
    %43 = vector.shape_cast %42 : vector<1x20x128xf32> to vector<20x128xf32>
    %cst_33 = arith.constant dense<0.000000e+00> : vector<8x128xf32>
    %44 = tpu.matmul %41, %43, %cst_33 {dimension_numbers = #tpu.dot_dimension_numbers<[1], [0], [0], [1], [0, 0, 1, 1], [], []>} : vector<8x20xf32>, vector<20x128xf32>, vector<8x128xf32> -> vector<8x128xf32>
    %45 = arith.addf %40, %44 : vector<8x128xf32>
    %46 = vector.extract_strided_slice %22 {offsets = [32, 0], sizes = [8, 20], strides = [1, 1]} : vector<80x20xf32> to vector<8x20xf32>
    %c4 = arith.constant 4 : index
    %c0_34 = arith.constant 0 : index
    %c0_35 = arith.constant 0 : index
    %47 = vector.load %arg8[%c4, %c0_34, %c0_35] : memref<10x20x128xf32, #tpu.memory_space<vmem>>, vector<1x20x128xf32>
    %48 = vector.shape_cast %47 : vector<1x20x128xf32> to vector<20x128xf32>
    %cst_36 = arith.constant dense<0.000000e+00> : vector<8x128xf32>
    %49 = tpu.matmul %46, %48, %cst_36 {dimension_numbers = #tpu.dot_dimension_numbers<[1], [0], [0], [1], [0, 0, 1, 1], [], []>} : vector<8x20xf32>, vector<20x128xf32>, vector<8x128xf32> -> vector<8x128xf32>
    %50 = arith.addf %45, %49 : vector<8x128xf32>
    %51 = vector.extract_strided_slice %22 {offsets = [40, 0], sizes = [8, 20], strides = [1, 1]} : vector<80x20xf32> to vector<8x20xf32>
    %c5 = arith.constant 5 : index
    %c0_37 = arith.constant 0 : index
    %c0_38 = arith.constant 0 : index
    %52 = vector.load %arg8[%c5, %c0_37, %c0_38] : memref<10x20x128xf32, #tpu.memory_space<vmem>>, vector<1x20x128xf32>
    %53 = vector.shape_cast %52 : vector<1x20x128xf32> to vector<20x128xf32>
    %cst_39 = arith.constant dense<0.000000e+00> : vector<8x128xf32>
    %54 = tpu.matmul %51, %53, %cst_39 {dimension_numbers = #tpu.dot_dimension_numbers<[1], [0], [0], [1], [0, 0, 1, 1], [], []>} : vector<8x20xf32>, vector<20x128xf32>, vector<8x128xf32> -> vector<8x128xf32>
    %55 = arith.addf %50, %54 : vector<8x128xf32>
    %56 = vector.extract_strided_slice %22 {offsets = [48, 0], sizes = [8, 20], strides = [1, 1]} : vector<80x20xf32> to vector<8x20xf32>
    %c6 = arith.constant 6 : index
    %c0_40 = arith.constant 0 : index
    %c0_41 = arith.constant 0 : index
    %57 = vector.load %arg8[%c6, %c0_40, %c0_41] : memref<10x20x128xf32, #tpu.memory_space<vmem>>, vector<1x20x128xf32>
    %58 = vector.shape_cast %57 : vector<1x20x128xf32> to vector<20x128xf32>
    %cst_42 = arith.constant dense<0.000000e+00> : vector<8x128xf32>
    %59 = tpu.matmul %56, %58, %cst_42 {dimension_numbers = #tpu.dot_dimension_numbers<[1], [0], [0], [1], [0, 0, 1, 1], [], []>} : vector<8x20xf32>, vector<20x128xf32>, vector<8x128xf32> -> vector<8x128xf32>
    %60 = arith.addf %55, %59 : vector<8x128xf32>
    %61 = vector.extract_strided_slice %22 {offsets = [56, 0], sizes = [8, 20], strides = [1, 1]} : vector<80x20xf32> to vector<8x20xf32>
    %c7 = arith.constant 7 : index
    %c0_43 = arith.constant 0 : index
    %c0_44 = arith.constant 0 : index
    %62 = vector.load %arg8[%c7, %c0_43, %c0_44] : memref<10x20x128xf32, #tpu.memory_space<vmem>>, vector<1x20x128xf32>
    %63 = vector.shape_cast %62 : vector<1x20x128xf32> to vector<20x128xf32>
    %cst_45 = arith.constant dense<0.000000e+00> : vector<8x128xf32>
    %64 = tpu.matmul %61, %63, %cst_45 {dimension_numbers = #tpu.dot_dimension_numbers<[1], [0], [0], [1], [0, 0, 1, 1], [], []>} : vector<8x20xf32>, vector<20x128xf32>, vector<8x128xf32> -> vector<8x128xf32>
    %65 = arith.addf %60, %64 : vector<8x128xf32>
    %66 = vector.extract_strided_slice %22 {offsets = [64, 0], sizes = [8, 20], strides = [1, 1]} : vector<80x20xf32> to vector<8x20xf32>
    %c8 = arith.constant 8 : index
    %c0_46 = arith.constant 0 : index
    %c0_47 = arith.constant 0 : index
    %67 = vector.load %arg8[%c8, %c0_46, %c0_47] : memref<10x20x128xf32, #tpu.memory_space<vmem>>, vector<1x20x128xf32>
    %68 = vector.shape_cast %67 : vector<1x20x128xf32> to vector<20x128xf32>
    %cst_48 = arith.constant dense<0.000000e+00> : vector<8x128xf32>
    %69 = tpu.matmul %66, %68, %cst_48 {dimension_numbers = #tpu.dot_dimension_numbers<[1], [0], [0], [1], [0, 0, 1, 1], [], []>} : vector<8x20xf32>, vector<20x128xf32>, vector<8x128xf32> -> vector<8x128xf32>
    %70 = arith.addf %65, %69 : vector<8x128xf32>
    %71 = vector.extract_strided_slice %22 {offsets = [72, 0], sizes = [8, 20], strides = [1, 1]} : vector<80x20xf32> to vector<8x20xf32>
    %c9 = arith.constant 9 : index
    %c0_49 = arith.constant 0 : index
    %c0_50 = arith.constant 0 : index
    %72 = vector.load %arg8[%c9, %c0_49, %c0_50] : memref<10x20x128xf32, #tpu.memory_space<vmem>>, vector<1x20x128xf32>
    %73 = vector.shape_cast %72 : vector<1x20x128xf32> to vector<20x128xf32>
    %cst_51 = arith.constant dense<0.000000e+00> : vector<8x128xf32>
    %74 = tpu.matmul %71, %73, %cst_51 {dimension_numbers = #tpu.dot_dimension_numbers<[1], [0], [0], [1], [0, 0, 1, 1], [], []>} : vector<8x20xf32>, vector<20x128xf32>, vector<8x128xf32> -> vector<8x128xf32>
    %75 = arith.addf %70, %74 : vector<8x128xf32>
    %c0_52 = arith.constant 0 : index
    %c0_53 = arith.constant 0 : index
    %76 = vector.load %arg10[%c0_52, %c0_53] : memref<8x128xf32, #tpu.memory_space<vmem>>, vector<8x128xf32>
    tpu.vector_store %arg10[%c0_52, %c0_53], %75 {strides = array<i32>} : memref<8x128xf32, #tpu.memory_space<vmem>>, vector<8x128xf32>,
    return
  }
  func.func @transform_0(%arg0: i32) -> (i32, i32, i32) {
    %c0_i32 = arith.constant 0 : i32
    %c0_i32_0 = arith.constant 0 : i32
    %c0_i32_1 = arith.constant 0 : i32
    return %c0_i32, %arg0, %c0_i32_0 : i32, i32, i32
  }
  func.func @transform_1(%arg0: i32) -> (i32, i32) {
    %c0_i32 = arith.constant 0 : i32
    %c0_i32_0 = arith.constant 0 : i32
    %c0_i32_1 = arith.constant 0 : i32
    return %c0_i32, %c0_i32_0 : i32, i32
  }
  func.func @transform_2(%arg0: i32) -> (i32, i32) {
    %c0_i32 = arith.constant 0 : i32
    %c0_i32_0 = arith.constant 0 : i32
    %c0_i32_1 = arith.constant 0 : i32
    return %c0_i32, %c0_i32_0 : i32, i32
  }
  func.func @transform_3(%arg0: i32) -> (i32, i32) {
    %c0_i32 = arith.constant 0 : i32
    %c0_i32_0 = arith.constant 0 : i32
    %c0_i32_1 = arith.constant 0 : i32
    return %c0_i32, %c0_i32_0 : i32, i32
  }
  func.func @transform_4(%arg0: i32) -> (i32, i32) {
    %c0_i32 = arith.constant 0 : i32
    %c0_i32_0 = arith.constant 0 : i32
    %c0_i32_1 = arith.constant 0 : i32
    return %c0_i32, %c0_i32_0 : i32, i32
  }
  func.func @transform_5(%arg0: i32) -> (i32, i32) {
    %c0_i32 = arith.constant 0 : i32
    %c0_i32_0 = arith.constant 0 : i32
    %c0_i32_1 = arith.constant 0 : i32
    return %c0_i32, %c0_i32_0 : i32, i32
  }
  func.func @transform_6(%arg0: i32) -> (i32, i32) {
    %c0_i32 = arith.constant 0 : i32
    %c0_i32_0 = arith.constant 0 : i32
    %c0_i32_1 = arith.constant 0 : i32
    return %c0_i32, %c0_i32_0 : i32, i32
  }
  func.func @transform_7(%arg0: i32) -> (i32, i32, i32) {
    %c0_i32 = arith.constant 0 : i32
    %c0_i32_0 = arith.constant 0 : i32
    %c0_i32_1 = arith.constant 0 : i32
    %c0_i32_2 = arith.constant 0 : i32
    return %c0_i32, %c0_i32_0, %c0_i32_1 : i32, i32, i32
  }
  func.func @transform_8(%arg0: i32) -> (i32, i32) {
    %c0_i32 = arith.constant 0 : i32
    %c0_i32_0 = arith.constant 0 : i32
    %c0_i32_1 = arith.constant 0 : i32
    return %c0_i32, %c0_i32_0 : i32, i32
  }
  func.func @transform_9(%arg0: i32) -> (i32, i32) {
    %c0_i32 = arith.constant 0 : i32
    %c0_i32_0 = arith.constant 0 : i32
    return %arg0, %c0_i32 : i32, i32
  }
}

</mosaic_0001>

<llo_original>
// kernel: match_predictor_forward.1
$region0: #{match_predictor_forward.1}
  #allocation0 [shape = 'u32[]', space=smem, size = 0x4, offset = 0x4, fixed_abs, tag = 'smem constant byte address 0x4 - core index']
  #allocation1 [shape = 'u32[144,128]{1,0:T(1,128)}', space=vmem, size = 0x12000, scoped, tag = 'internal scratch']
  %s0 = inlined_call_operand.vmem [shape: f32[10,8,18], index: 0, kind: input, shape index: {}]
  %s1 = inlined_call_operand.vmem [shape: f32[18,100], index: 1, kind: input, shape index: {}]
  %s2 = inlined_call_operand.vmem [shape: f32[1,100], index: 2, kind: input, shape index: {}]
  %s3 = inlined_call_operand.vmem [shape: f32[100,50], index: 3, kind: input, shape index: {}]
  %s4 = inlined_call_operand.vmem [shape: f32[1,50], index: 4, kind: input, shape index: {}]
  %s5 = inlined_call_operand.vmem [shape: f32[50,20], index: 5, kind: input, shape index: {}]
  %s6 = inlined_call_operand.vmem [shape: f32[1,20], index: 6, kind: input, shape index: {}]
  %s7 = inlined_call_operand.vmem [shape: f32[10,20,128], index: 7, kind: input, shape index: {}]
  %s8 = inlined_call_operand.vmem [shape: f32[1,128], index: 8, kind: input, shape index: {}]
  %s9 = inlined_call_operand.vmem [shape: f32[8,128], index: 9, kind: output, shape index: {}]
  %s10 = sld [smem:[#allocation0]]
  $region46: #{match_predictor_forward.1} parent=0
    _
  %s12 = ssub.s32 1, %s10
  %s13 = scalar_select 0, %s12, %s10
  // Predicated region
  $region2: #{match_predictor_forward.1} parent=0 // pred_check
    _
  $region3: #{match_predictor_forward.1} parent=0 // pred_check_branch
    %15 = sbr.rel (0) target = $region5
  $region4: #{match_predictor_forward.1} parent=0 // pred_region
    _
  $region5: #{match_predictor_forward.1} parent=0 // pred_fallthru
    _
  // Predicated region
  $region6: #{match_predictor_forward.1} parent=0 // pred_check
    _
  $region7: #{match_predictor_forward.1} parent=0 // pred_check_branch
    %17 = sbr.rel (0) target = $region9
  $region8: #{match_predictor_forward.1} parent=0 // pred_region
    _
  $region9: #{match_predictor_forward.1} parent=0 // pred_fallthru
    _
  // Predicated region
  $region10: #{match_predictor_forward.1} parent=0 // pred_check
    _
  $region11: #{match_predictor_forward.1} parent=0 // pred_check_branch
    %19 = sbr.rel (0) target = $region13
  $region12: #{match_predictor_forward.1} parent=0 // pred_region
    _
  $region13: #{match_predictor_forward.1} parent=0 // pred_fallthru
    _
  // Predicated region
  $region14: #{match_predictor_forward.1} parent=0 // pred_check
    _
  $region15: #{match_predictor_forward.1} parent=0 // pred_check_branch
    %21 = sbr.rel (0) target = $region17
  $region16: #{match_predictor_forward.1} parent=0 // pred_region
    _
  $region17: #{match_predictor_forward.1} parent=0 // pred_fallthru
    _
  // Predicated region
  $region18: #{match_predictor_forward.1} parent=0 // pred_check
    _
  $region19: #{match_predictor_forward.1} parent=0 // pred_check_branch
    %23 = sbr.rel (0) target = $region21
  $region20: #{match_predictor_forward.1} parent=0 // pred_region
    _
  $region21: #{match_predictor_forward.1} parent=0 // pred_fallthru
    _
  // Predicated region
  $region22: #{match_predictor_forward.1} parent=0 // pred_check
    _
  $region23: #{match_predictor_forward.1} parent=0 // pred_check_branch
    %25 = sbr.rel (0) target = $region25
  $region24: #{match_predictor_forward.1} parent=0 // pred_region
    _
  $region25: #{match_predictor_forward.1} parent=0 // pred_fallthru
    _
  // Predicated region
  $region26: #{match_predictor_forward.1} parent=0 // pred_check
    _
  $region27: #{match_predictor_forward.1} parent=0 // pred_check_branch
    %27 = sbr.rel (0) target = $region29
  $region28: #{match_predictor_forward.1} parent=0 // pred_region
    _
  $region29: #{match_predictor_forward.1} parent=0 // pred_fallthru
    _
  // Predicated region
  $region30: #{match_predictor_forward.1} parent=0 // pred_check
    _
  $region31: #{match_predictor_forward.1} parent=0 // pred_check_branch
    %29 = sbr.rel (0) target = $region33
  $region32: #{match_predictor_forward.1} parent=0 // pred_region
    _
  $region33: #{match_predictor_forward.1} parent=0 // pred_fallthru
    _
  // Predicated region
  $region34: #{match_predictor_forward.1} parent=0 // pred_check
    _
  $region35: #{match_predictor_forward.1} parent=0 // pred_check_branch
    %31 = sbr.rel (0) target = $region37
  $region36: #{match_predictor_forward.1} parent=0 // pred_region
    _
  $region37: #{match_predictor_forward.1} parent=0 // pred_fallthru
    _
  %v32 = vld [vmem:[%s0] sm:$0xff]
  %v33 = vld [vmem:[%s0 + $0x8] sm:$0xff]
  %v34 = vld [vmem:[%s0 + $0x10] sm:$0xff]
  %v35 = vld [vmem:[%s0 + $0x18] sm:$0xff]
  %v36 = vld [vmem:[%s0 + $0x20] sm:$0xff]
  %v37 = vld [vmem:[%s0 + $0x28] sm:$0xff]
  %v38 = vld [vmem:[%s0 + $0x30] sm:$0xff]
  %v39 = vld [vmem:[%s0 + $0x38] sm:$0xff]
  %v40 = vld [vmem:[%s0 + $0x40] sm:$0xff]
  %v41 = vld [vmem:[%s0 + $0x48] sm:$0xff]
  %v42 = vld [vmem:[%s1] sm:$0xff]
  %v43 = vld [vmem:[%s1 + $0x8] sm:$0xff]
  %v44 = vld [vmem:[%s1 + $0x10] sm:$0x3]
  %v45 = vld [vmem:[%s2] sm:$0x1]
  %v47 = vlaneseq
  %v48 = vshrl.u32 %v47, 7
  %v49 = vsub.s32 0, %v48
  %v50 = vrot.slane %v45, %v49
  %vm52 = vcmask 146432
  %v54 = vsel %vm52, %v32, 0
  %v57 = vsel %vm52, %v33, 0
  %v60 = vsel %vm52, %v34, 0
  %v63 = vsel %vm52, %v35, 0
  %v66 = vsel %vm52, %v36, 0
  %v69 = vsel %vm52, %v37, 0
  %v72 = vsel %vm52, %v38, 0
  %v75 = vsel %vm52, %v39, 0
  %v78 = vsel %vm52, %v40, 0
  %v81 = vsel %vm52, %v41, 0
  %vm83 = vcmask 1041408
  %v85 = vsel %vm83, %v44, 0
  %87 = vmatprep.subr.mxu0 0.0
  %88 = vmatpush1.msra.mxu0 %v42
  %89 = vmatprep.subr.mxu0 0.0
  %90 = vmatpush1.msra.mxu0 %v43
  %91 = vmatprep.subr.mxu0 0.0
  %92 = vmatpush1.msra.mxu0 %v85
  %93 = vmatprep.subr.mxu0 0.0
  %94 = vmatpush1.msra.mxu0 0.0
  %95 = vmatprep.subr.mxu0 0.0
  %96 = vmatpush1.msra.mxu0 0.0
  %97 = vmatprep.subr.mxu0 0.0
  %98 = vmatpush1.msra.mxu0 0.0
  %99 = vmatprep.subr.mxu0 0.0
  %100 = vmatpush1.msra.mxu0 0.0
  %101 = vmatprep.subr.mxu0 0.0
  %102 = vmatpush1.msra.mxu0 0.0
  %103 = vmatprep.subr.mxu0 0.0
  %104 = vmatpush1.msra.mxu0 0.0
  %105 = vmatprep.subr.mxu0 0.0
  %106 = vmatpush1.msra.mxu0 0.0
  %107 = vmatprep.subr.mxu0 0.0
  %108 = vmatpush1.msra.mxu0 0.0
  %109 = vmatprep.subr.mxu0 0.0
  %110 = vmatpush1.msra.mxu0 0.0
  %111 = vmatprep.subr.mxu0 0.0
  %112 = vmatpush1.msra.mxu0 0.0
  %113 = vmatprep.subr.mxu0 0.0
  %114 = vmatpush1.msra.mxu0 0.0
  %115 = vmatprep.subr.mxu0 0.0
  %116 = vmatpush1.msra.mxu0 0.0
  %117 = vmatprep.subr.mxu0 0.0
  %118 = vmatpush1.msra.mxu0 0.0
  %119 = vmatprep.subr.mxu0 0.0
  %120 = vmatpush1.msra.mxu0 0.0
  %121 = vmatprep.subr.mxu0 0.0
  %122 = vmatpush1.msra.mxu0 0.0
  %123 = vmatprep.subr.mxu0 0.0
  %124 = vmatpush1.msra.mxu0 0.0
  %125 = vmatprep.subr.mxu0 0.0
  %126 = vmatpush1.msra.mxu0 0.0
  %127 = vmatprep.subr.mxu0 0.0
  %128 = vmatpush1.msra.mxu0 0.0
  %129 = vmatprep.subr.mxu0 0.0
  %130 = vmatpush1.msra.mxu0 0.0
  %131 = vmatprep.subr.mxu0 0.0
  %132 = vmatpush1.msra.mxu0 0.0
  %133 = vmatprep.subr.mxu0 0.0
  %134 = vmatpush1.msra.mxu0 0.0
  %135 = vmatprep.subr.mxu0 0.0
  %136 = vmatpush1.msra.mxu0 0.0
  %137 = vmatprep.subr.mxu0 0.0
  %138 = vmatpush1.msra.mxu0 0.0
  %139 = vmatprep.subr.mxu0 0.0
  %140 = vmatpush1.msra.mxu0 0.0
  %141 = vmatprep.subr.mxu0 0.0
  %142 = vmatpush1.msra.mxu0 0.0
  %143 = vmatprep.subr.mxu0 0.0
  %144 = vmatpush1.msra.mxu0 0.0
  %145 = vmatprep.subr.mxu0 0.0
  %146 = vmatpush1.msra.mxu0 0.0
  %147 = vmatprep.subr.mxu0 0.0
  %148 = vmatpush1.msra.mxu0 0.0
  %149 = vmatprep.subr.mxu0 0.0
  %150 = vmatpush1.msra.mxu0 0.0
  %151 = vmatprep.mubr.f32.mxu0 0.0
  %152 = vmatmul.mubr.f32.gmra.mrb[0].mxu0 %v54
  %v153 = vpop.f32.mrb[0].mxu0
  %v154 = vadd.f32 %v50, %v153
  %v155 = vpop.f32.mrb[0].mxu0
  %156 = vmatprep.mubr.f32.mxu0 0.0
  %157 = vmatmul.mubr.f32.gmra.mrb[0].mxu0 %v57
  %v158 = vpop.f32.mrb[0].mxu0
  %v159 = vadd.f32 %v50, %v158
  %v160 = vpop.f32.mrb[0].mxu0
  %161 = vmatprep.mubr.f32.mxu0 0.0
  %162 = vmatmul.mubr.f32.gmra.mrb[0].mxu0 %v60
  %v163 = vpop.f32.mrb[0].mxu0
  %v164 = vadd.f32 %v50, %v163
  %v165 = vpop.f32.mrb[0].mxu0
  %166 = vmatprep.mubr.f32.mxu0 0.0
  %167 = vmatmul.mubr.f32.gmra.mrb[0].mxu0 %v63
  %v168 = vpop.f32.mrb[0].mxu0
  %v169 = vadd.f32 %v50, %v168
  %v170 = vpop.f32.mrb[0].mxu0
  %171 = vmatprep.mubr.f32.mxu0 0.0
  %172 = vmatmul.mubr.f32.gmra.mrb[0].mxu0 %v66
  %v173 = vpop.f32.mrb[0].mxu0
  %v174 = vadd.f32 %v50, %v173
  %v175 = vpop.f32.mrb[0].mxu0
  %176 = vmatprep.mubr.f32.mxu0 0.0
  %177 = vmatmul.mubr.f32.gmra.mrb[0].mxu0 %v69
  %v178 = vpop.f32.mrb[0].mxu0
  %v179 = vadd.f32 %v50, %v178
  %v180 = vpop.f32.mrb[0].mxu0
  %181 = vmatprep.mubr.f32.mxu0 0.0
  %182 = vmatmul.mubr.f32.gmra.mrb[0].mxu0 %v72
  %v183 = vpop.f32.mrb[0].mxu0
  %v184 = vadd.f32 %v50, %v183
  %v185 = vpop.f32.mrb[0].mxu0
  %186 = vmatprep.mubr.f32.mxu0 0.0
  %187 = vmatmul.mubr.f32.gmra.mrb[0].mxu0 %v75
  %v188 = vpop.f32.mrb[0].mxu0
  %v189 = vadd.f32 %v50, %v188
  %v190 = vpop.f32.mrb[0].mxu0
  %191 = vmatprep.mubr.f32.mxu0 0.0
  %192 = vmatmul.mubr.f32.gmra.mrb[0].mxu0 %v78
  %v193 = vpop.f32.mrb[0].mxu0
  %v194 = vadd.f32 %v50, %v193
  %v195 = vpop.f32.mrb[0].mxu0
  %196 = vmatprep.mubr.f32.mxu0 0.0
  %197 = vmatmul.mubr.f32.gmra.mrb[0].mxu0 %v81
  %v198 = vpop.f32.mrb[0].mxu0
  %v199 = vadd.f32 %v50, %v198
  %v200 = vpop.f32.mrb[0].mxu0
  %201 = vdwg.mxu0
  %v202 = vmax.f32 %v154, 0.0
  %v203 = vmax.f32 %v159, 0.0
  %v204 = vmax.f32 %v164, 0.0
  %v205 = vmax.f32 %v169, 0.0
  %v206 = vmax.f32 %v174, 0.0
  %v207 = vmax.f32 %v179, 0.0
  %v208 = vmax.f32 %v184, 0.0
  %v209 = vmax.f32 %v189, 0.0
  %v210 = vmax.f32 %v194, 0.0
  %v211 = vmax.f32 %v199, 0.0
  %v212 = vld [vmem:[%s3] sm:$0xff]
  %v213 = vld [vmem:[%s3 + $0x8] sm:$0xff]
  %v214 = vld [vmem:[%s3 + $0x10] sm:$0xff]
  %v215 = vld [vmem:[%s3 + $0x18] sm:$0xff]
  %v216 = vld [vmem:[%s3 + $0x20] sm:$0xff]
  %v217 = vld [vmem:[%s3 + $0x28] sm:$0xff]
  %v218 = vld [vmem:[%s3 + $0x30] sm:$0xff]
  %v219 = vld [vmem:[%s3 + $0x38] sm:$0xff]
  %v220 = vld [vmem:[%s3 + $0x40] sm:$0xff]
  %v221 = vld [vmem:[%s3 + $0x48] sm:$0xff]
  %v222 = vld [vmem:[%s3 + $0x50] sm:$0xff]
  %v223 = vld [vmem:[%s3 + $0x58] sm:$0xff]
  %v224 = vld [vmem:[%s3 + $0x60] sm:$0xf]
  %v225 = vld [vmem:[%s4] sm:$0x1]
  %v227 = vlaneseq
  %v228 = vshrl.u32 %v227, 7
  %v229 = vsub.s32 0, %v228
  %v230 = vrot.slane %v225, %v229
  %vm232 = vcmask 818176
  %v234 = vsel %vm232, %v202, 0
  %v237 = vsel %vm232, %v203, 0
  %v240 = vsel %vm232, %v204, 0
  %v243 = vsel %vm232, %v205, 0
  %v246 = vsel %vm232, %v206, 0
  %v249 = vsel %vm232, %v207, 0
  %v252 = vsel %vm232, %v208, 0
  %v255 = vsel %vm232, %v209, 0
  %v258 = vsel %vm232, %v210, 0
  %v261 = vsel %vm232, %v211, 0
  %vm263 = vcmask 1043456
  %v265 = vsel %vm263, %v224, 0
  %267 = vmatprep.subr.mxu0 0.0
  %268 = vmatpush1.msra.mxu0 %v212
  %269 = vmatprep.subr.mxu0 0.0
  %270 = vmatpush1.msra.mxu0 %v213
  %271 = vmatprep.subr.mxu0 0.0
  %272 = vmatpush1.msra.mxu0 %v214
  %273 = vmatprep.subr.mxu0 0.0
  %274 = vmatpush1.msra.mxu0 %v215
  %275 = vmatprep.subr.mxu0 0.0
  %276 = vmatpush1.msra.mxu0 %v216
  %277 = vmatprep.subr.mxu0 0.0
  %278 = vmatpush1.msra.mxu0 %v217
  %279 = vmatprep.subr.mxu0 0.0
  %280 = vmatpush1.msra.mxu0 %v218
  %281 = vmatprep.subr.mxu0 0.0
  %282 = vmatpush1.msra.mxu0 %v219
  %283 = vmatprep.subr.mxu0 0.0
  %284 = vmatpush1.msra.mxu0 %v220
  %285 = vmatprep.subr.mxu0 0.0
  %286 = vmatpush1.msra.mxu0 %v221
  %287 = vmatprep.subr.mxu0 0.0
  %288 = vmatpush1.msra.mxu0 %v222
  %289 = vmatprep.subr.mxu0 0.0
  %290 = vmatpush1.msra.mxu0 %v223
  %291 = vmatprep.subr.mxu0 0.0
  %292 = vmatpush1.msra.mxu0 %v265
  %293 = vmatprep.subr.mxu0 0.0
  %294 = vmatpush1.msra.mxu0 0.0
  %295 = vmatprep.subr.mxu0 0.0
  %296 = vmatpush1.msra.mxu0 0.0
  %297 = vmatprep.subr.mxu0 0.0
  %298 = vmatpush1.msra.mxu0 0.0
  %299 = vmatprep.subr.mxu0 0.0
  %300 = vmatpush1.msra.mxu0 0.0
  %301 = vmatprep.subr.mxu0 0.0
  %302 = vmatpush1.msra.mxu0 0.0
  %303 = vmatprep.subr.mxu0 0.0
  %304 = vmatpush1.msra.mxu0 0.0
  %305 = vmatprep.subr.mxu0 0.0
  %306 = vmatpush1.msra.mxu0 0.0
  %307 = vmatprep.subr.mxu0 0.0
  %308 = vmatpush1.msra.mxu0 0.0
  %309 = vmatprep.subr.mxu0 0.0
  %310 = vmatpush1.msra.mxu0 0.0
  %311 = vmatprep.subr.mxu0 0.0
  %312 = vmatpush1.msra.mxu0 0.0
  %313 = vmatprep.subr.mxu0 0.0
  %314 = vmatpush1.msra.mxu0 0.0
  %315 = vmatprep.subr.mxu0 0.0
  %316 = vmatpush1.msra.mxu0 0.0
  %317 = vmatprep.subr.mxu0 0.0
  %318 = vmatpush1.msra.mxu0 0.0
  %319 = vmatprep.subr.mxu0 0.0
  %320 = vmatpush1.msra.mxu0 0.0
  %321 = vmatprep.subr.mxu0 0.0
  %322 = vmatpush1.msra.mxu0 0.0
  %323 = vmatprep.subr.mxu0 0.0
  %324 = vmatpush1.msra.mxu0 0.0
  %325 = vmatprep.subr.mxu0 0.0
  %326 = vmatpush1.msra.mxu0 0.0
  %327 = vmatprep.subr.mxu0 0.0
  %328 = vmatpush1.msra.mxu0 0.0
  %329 = vmatprep.subr.mxu0 0.0
  %330 = vmatpush1.msra.mxu0 0.0
  %331 = vmatprep.mubr.f32.mxu0 0.0
  %332 = vmatmul.mubr.f32.gmra.mrb[0].mxu0 %v234
  %v333 = vpop.f32.mrb[0].mxu0
  %v334 = vadd.f32 %v230, %v333
  %v335 = vpop.f32.mrb[0].mxu0
  %336 = vmatprep.mubr.f32.mxu0 0.0
  %337 = vmatmul.mubr.f32.gmra.mrb[0].mxu0 %v237
  %v338 = vpop.f32.mrb[0].mxu0
  %v339 = vadd.f32 %v230, %v338
  %v340 = vpop.f32.mrb[0].mxu0
  %341 = vmatprep.mubr.f32.mxu0 0.0
  %342 = vmatmul.mubr.f32.gmra.mrb[0].mxu0 %v240
  %v343 = vpop.f32.mrb[0].mxu0
  %v344 = vadd.f32 %v230, %v343
  %v345 = vpop.f32.mrb[0].mxu0
  %346 = vmatprep.mubr.f32.mxu0 0.0
  %347 = vmatmul.mubr.f32.gmra.mrb[0].mxu0 %v243
  %v348 = vpop.f32.mrb[0].mxu0
  %v349 = vadd.f32 %v230, %v348
  %v350 = vpop.f32.mrb[0].mxu0
  %351 = vmatprep.mubr.f32.mxu0 0.0
  %352 = vmatmul.mubr.f32.gmra.mrb[0].mxu0 %v246
  %v353 = vpop.f32.mrb[0].mxu0
  %v354 = vadd.f32 %v230, %v353
  %v355 = vpop.f32.mrb[0].mxu0
  %356 = vmatprep.mubr.f32.mxu0 0.0
  %357 = vmatmul.mubr.f32.gmra.mrb[0].mxu0 %v249
  %v358 = vpop.f32.mrb[0].mxu0
  %v359 = vadd.f32 %v230, %v358
  %v360 = vpop.f32.mrb[0].mxu0
  %361 = vmatprep.mubr.f32.mxu0 0.0
  %362 = vmatmul.mubr.f32.gmra.mrb[0].mxu0 %v252
  %v363 = vpop.f32.mrb[0].mxu0
  %v364 = vadd.f32 %v230, %v363
  %v365 = vpop.f32.mrb[0].mxu0
  %366 = vmatprep.mubr.f32.mxu0 0.0
  %367 = vmatmul.mubr.f32.gmra.mrb[0].mxu0 %v255
  %v368 = vpop.f32.mrb[0].mxu0
  %v369 = vadd.f32 %v230, %v368
  %v370 = vpop.f32.mrb[0].mxu0
  %371 = vmatprep.mubr.f32.mxu0 0.0
  %372 = vmatmul.mubr.f32.gmra.mrb[0].mxu0 %v258
  %v373 = vpop.f32.mrb[0].mxu0
  %v374 = vadd.f32 %v230, %v373
  %v375 = vpop.f32.mrb[0].mxu0
  %376 = vmatprep.mubr.f32.mxu0 0.0
  %377 = vmatmul.mubr.f32.gmra.mrb[0].mxu0 %v261
  %v378 = vpop.f32.mrb[0].mxu0
  %v379 = vadd.f32 %v230, %v378
  %v380 = vpop.f32.mrb[0].mxu0
  %381 = vdwg.mxu0
  %v382 = vmax.f32 %v334, 0.0
  %v383 = vmax.f32 %v339, 0.0
  %v384 = vmax.f32 %v344, 0.0
  %v385 = vmax.f32 %v349, 0.0
  %v386 = vmax.f32 %v354, 0.0
  %v387 = vmax.f32 %v359, 0.0
  %v388 = vmax.f32 %v364, 0.0
  %v389 = vmax.f32 %v369, 0.0
  %v390 = vmax.f32 %v374, 0.0
  %v391 = vmax.f32 %v379, 0.0
  %v392 = vld [vmem:[%s5] sm:$0xff]
  %v393 = vld [vmem:[%s5 + $0x8] sm:$0xff]
  %v394 = vld [vmem:[%s5 + $0x10] sm:$0xff]
  %v395 = vld [vmem:[%s5 + $0x18] sm:$0xff]
  %v396 = vld [vmem:[%s5 + $0x20] sm:$0xff]
  %v397 = vld [vmem:[%s5 + $0x28] sm:$0xff]
  %v398 = vld [vmem:[%s5 + $0x30] sm:$0x3]
  %v399 = vld [vmem:[%s6] sm:$0x1]
  %v401 = vlaneseq
  %v402 = vshrl.u32 %v401, 7
  %v403 = vsub.s32 0, %v402
  %v404 = vrot.slane %v399, %v403
  %vm406 = vcmask 408576
  %v408 = vsel %vm406, %v382, 0
  %v411 = vsel %vm406, %v383, 0
  %v414 = vsel %vm406, %v384, 0
  %v417 = vsel %vm406, %v385, 0
  %v420 = vsel %vm406, %v386, 0
  %v423 = vsel %vm406, %v387, 0
  %v426 = vsel %vm406, %v388, 0
  %v429 = vsel %vm406, %v389, 0
  %v432 = vsel %vm406, %v390, 0
  %v435 = vsel %vm406, %v391, 0
  %v438 = vsel %vm83, %v398, 0
  %440 = vmatprep.subr.mxu0 0.0
  %441 = vmatpush1.msra.mxu0 %v392
  %442 = vmatprep.subr.mxu0 0.0
  %443 = vmatpush1.msra.mxu0 %v393
  %444 = vmatprep.subr.mxu0 0.0
  %445 = vmatpush1.msra.mxu0 %v394
  %446 = vmatprep.subr.mxu0 0.0
  %447 = vmatpush1.msra.mxu0 %v395
  %448 = vmatprep.subr.mxu0 0.0
  %449 = vmatpush1.msra.mxu0 %v396
  %450 = vmatprep.subr.mxu0 0.0
  %451 = vmatpush1.msra.mxu0 %v397
  %452 = vmatprep.subr.mxu0 0.0
  %453 = vmatpush1.msra.mxu0 %v438
  %454 = vmatprep.subr.mxu0 0.0
  %455 = vmatpush1.msra.mxu0 0.0
  %456 = vmatprep.subr.mxu0 0.0
  %457 = vmatpush1.msra.mxu0 0.0
  %458 = vmatprep.subr.mxu0 0.0
  %459 = vmatpush1.msra.mxu0 0.0
  %460 = vmatprep.subr.mxu0 0.0
  %461 = vmatpush1.msra.mxu0 0.0
  %462 = vmatprep.subr.mxu0 0.0
  %463 = vmatpush1.msra.mxu0 0.0
  %464 = vmatprep.subr.mxu0 0.0
  %465 = vmatpush1.msra.mxu0 0.0
  %466 = vmatprep.subr.mxu0 0.0
  %467 = vmatpush1.msra.mxu0 0.0
  %468 = vmatprep.subr.mxu0 0.0
  %469 = vmatpush1.msra.mxu0 0.0
  %470 = vmatprep.subr.mxu0 0.0
  %471 = vmatpush1.msra.mxu0 0.0
  %472 = vmatprep.subr.mxu0 0.0
  %473 = vmatpush1.msra.mxu0 0.0
  %474 = vmatprep.subr.mxu0 0.0
  %475 = vmatpush1.msra.mxu0 0.0
  %476 = vmatprep.subr.mxu0 0.0
  %477 = vmatpush1.msra.mxu0 0.0
  %478 = vmatprep.subr.mxu0 0.0
  %479 = vmatpush1.msra.mxu0 0.0
  %480 = vmatprep.subr.mxu0 0.0
  %481 = vmatpush1.msra.mxu0 0.0
  %482 = vmatprep.subr.mxu0 0.0
  %483 = vmatpush1.msra.mxu0 0.0
  %484 = vmatprep.subr.mxu0 0.0
  %485 = vmatpush1.msra.mxu0 0.0
  %486 = vmatprep.subr.mxu0 0.0
  %487 = vmatpush1.msra.mxu0 0.0
  %488 = vmatprep.subr.mxu0 0.0
  %489 = vmatpush1.msra.mxu0 0.0
  %490 = vmatprep.subr.mxu0 0.0
  %491 = vmatpush1.msra.mxu0 0.0
  %492 = vmatprep.subr.mxu0 0.0
  %493 = vmatpush1.msra.mxu0 0.0
  %494 = vmatprep.subr.mxu0 0.0
  %495 = vmatpush1.msra.mxu0 0.0
  %496 = vmatprep.subr.mxu0 0.0
  %497 = vmatpush1.msra.mxu0 0.0
  %498 = vmatprep.subr.mxu0 0.0
  %499 = vmatpush1.msra.mxu0 0.0
  %500 = vmatprep.subr.mxu0 0.0
  %501 = vmatpush1.msra.mxu0 0.0
  %502 = vmatprep.subr.mxu0 0.0
  %503 = vmatpush1.msra.mxu0 0.0
  %504 = vmatprep.mubr.f32.mxu0 0.0
  %505 = vmatmul.mubr.f32.gmra.mrb[0].mxu0 %v408
  %v506 = vpop.f32.mrb[0].mxu0
  %v507 = vadd.f32 %v404, %v506
  %v508 = vpop.f32.mrb[0].mxu0
  %509 = vmatprep.mubr.f32.mxu0 0.0
  %510 = vmatmul.mubr.f32.gmra.mrb[0].mxu0 %v411
  %v511 = vpop.f32.mrb[0].mxu0
  %v512 = vadd.f32 %v404, %v511
  %v513 = vpop.f32.mrb[0].mxu0
  %514 = vmatprep.mubr.f32.mxu0 0.0
  %515 = vmatmul.mubr.f32.gmra.mrb[0].mxu0 %v414
  %v516 = vpop.f32.mrb[0].mxu0
  %v517 = vadd.f32 %v404, %v516
  %v518 = vpop.f32.mrb[0].mxu0
  %519 = vmatprep.mubr.f32.mxu0 0.0
  %520 = vmatmul.mubr.f32.gmra.mrb[0].mxu0 %v417
  %v521 = vpop.f32.mrb[0].mxu0
  %v522 = vadd.f32 %v404, %v521
  %v523 = vpop.f32.mrb[0].mxu0
  %524 = vmatprep.mubr.f32.mxu0 0.0
  %525 = vmatmul.mubr.f32.gmra.mrb[0].mxu0 %v420
  %v526 = vpop.f32.mrb[0].mxu0
  %v527 = vadd.f32 %v404, %v526
  %v528 = vpop.f32.mrb[0].mxu0
  %529 = vmatprep.mubr.f32.mxu0 0.0
  %530 = vmatmul.mubr.f32.gmra.mrb[0].mxu0 %v423
  %v531 = vpop.f32.mrb[0].mxu0
  %v532 = vadd.f32 %v404, %v531
  %v533 = vpop.f32.mrb[0].mxu0
  %534 = vmatprep.mubr.f32.mxu0 0.0
  %535 = vmatmul.mubr.f32.gmra.mrb[0].mxu0 %v426
  %v536 = vpop.f32.mrb[0].mxu0
  %v537 = vadd.f32 %v404, %v536
  %v538 = vpop.f32.mrb[0].mxu0
  %539 = vmatprep.mubr.f32.mxu0 0.0
  %540 = vmatmul.mubr.f32.gmra.mrb[0].mxu0 %v429
  %v541 = vpop.f32.mrb[0].mxu0
  %v542 = vadd.f32 %v404, %v541
  %v543 = vpop.f32.mrb[0].mxu0
  %544 = vmatprep.mubr.f32.mxu0 0.0
  %545 = vmatmul.mubr.f32.gmra.mrb[0].mxu0 %v432
  %v546 = vpop.f32.mrb[0].mxu0
  %v547 = vadd.f32 %v404, %v546
  %v548 = vpop.f32.mrb[0].mxu0
  %549 = vmatprep.mubr.f32.mxu0 0.0
  %550 = vmatmul.mubr.f32.gmra.mrb[0].mxu0 %v435
  %v551 = vpop.f32.mrb[0].mxu0
  %v552 = vadd.f32 %v404, %v551
  %v553 = vpop.f32.mrb[0].mxu0
  %554 = vdwg.mxu0
  %v555 = vmax.f32 %v507, 0.0
  %v556 = vmax.f32 %v512, 0.0
  %v557 = vmax.f32 %v517, 0.0
  %v558 = vmax.f32 %v522, 0.0
  %v559 = vmax.f32 %v527, 0.0
  %v560 = vmax.f32 %v532, 0.0
  %v561 = vmax.f32 %v537, 0.0
  %v562 = vmax.f32 %v542, 0.0
  %v563 = vmax.f32 %v547, 0.0
  %v564 = vmax.f32 %v552, 0.0
  %v565 = vld [vmem:[%s8] sm:$0x1]
  %v567 = vlaneseq
  %v568 = vshrl.u32 %v567, 7
  %v569 = vsub.s32 0, %v568
  %v570 = vrot.slane %v565, %v569
  %v572 = vld [vmem:[%s7] sm:$0xff]
  %v573 = vld [vmem:[%s7 + $0x8] sm:$0xff]
  %v574 = vld [vmem:[%s7 + $0x10] sm:$0xf]
  %vm575 = vcmask 162816
  %v577 = vsel %vm575, %v555, 0
  %v580 = vsel %vm263, %v574, 0
  %582 = vmatprep.subr.mxu0 0.0
  %583 = vmatpush1.msra.mxu0 %v572
  %584 = vmatprep.subr.mxu0 0.0
  %585 = vmatpush1.msra.mxu0 %v573
  %586 = vmatprep.subr.mxu0 0.0
  %587 = vmatpush1.msra.mxu0 %v580
  %588 = vmatprep.subr.mxu0 0.0
  %589 = vmatpush1.msra.mxu0 0.0
  %590 = vmatprep.subr.mxu0 0.0
  %591 = vmatpush1.msra.mxu0 0.0
  %592 = vmatprep.subr.mxu0 0.0
  %593 = vmatpush1.msra.mxu0 0.0
  %594 = vmatprep.subr.mxu0 0.0
  %595 = vmatpush1.msra.mxu0 0.0
  %596 = vmatprep.subr.mxu0 0.0
  %597 = vmatpush1.msra.mxu0 0.0
  %598 = vmatprep.subr.mxu0 0.0
  %599 = vmatpush1.msra.mxu0 0.0
  %600 = vmatprep.subr.mxu0 0.0
  %601 = vmatpush1.msra.mxu0 0.0
  %602 = vmatprep.subr.mxu0 0.0
  %603 = vmatpush1.msra.mxu0 0.0
  %604 = vmatprep.subr.mxu0 0.0
  %605 = vmatpush1.msra.mxu0 0.0
  %606 = vmatprep.subr.mxu0 0.0
  %607 = vmatpush1.msra.mxu0 0.0
  %608 = vmatprep.subr.mxu0 0.0
  %609 = vmatpush1.msra.mxu0 0.0
  %610 = vmatprep.subr.mxu0 0.0
  %611 = vmatpush1.msra.mxu0 0.0
  %612 = vmatprep.subr.mxu0 0.0
  %613 = vmatpush1.msra.mxu0 0.0
  %614 = vmatprep.subr.mxu0 0.0
  %615 = vmatpush1.msra.mxu0 0.0
  %616 = vmatprep.subr.mxu0 0.0
  %617 = vmatpush1.msra.mxu0 0.0
  %618 = vmatprep.subr.mxu0 0.0
  %619 = vmatpush1.msra.mxu0 0.0
  %620 = vmatprep.subr.mxu0 0.0
  %621 = vmatpush1.msra.mxu0 0.0
  %622 = vmatprep.subr.mxu0 0.0
  %623 = vmatpush1.msra.mxu0 0.0
  %624 = vmatprep.subr.mxu0 0.0
  %625 = vmatpush1.msra.mxu0 0.0
  %626 = vmatprep.subr.mxu0 0.0
  %627 = vmatpush1.msra.mxu0 0.0
  %628 = vmatprep.subr.mxu0 0.0
  %629 = vmatpush1.msra.mxu0 0.0
  %630 = vmatprep.subr.mxu0 0.0
  %631 = vmatpush1.msra.mxu0 0.0
  %632 = vmatprep.subr.mxu0 0.0
  %633 = vmatpush1.msra.mxu0 0.0
  %634 = vmatprep.subr.mxu0 0.0
  %635 = vmatpush1.msra.mxu0 0.0
  %636 = vmatprep.subr.mxu0 0.0
  %637 = vmatpush1.msra.mxu0 0.0
  %638 = vmatprep.subr.mxu0 0.0
  %639 = vmatpush1.msra.mxu0 0.0
  %640 = vmatprep.subr.mxu0 0.0
  %641 = vmatpush1.msra.mxu0 0.0
  %642 = vmatprep.subr.mxu0 0.0
  %643 = vmatpush1.msra.mxu0 0.0
  %644 = vmatprep.subr.mxu0 0.0
  %645 = vmatpush1.msra.mxu0 0.0
  %646 = vmatprep.mubr.f32.mxu0 0.0
  %647 = vmatmul.mubr.f32.gmra.mrb[0].mxu0 %v577
  %v648 = vpop.f32.mrb[0].mxu0
  %v649 = vadd.f32 0.0, %v648
  %v650 = vpop.f32.mrb[0].mxu0
  %651 = vdwg.mxu0
  %v652 = vadd.f32 %v570, %v649
  %s653 = scalar_lea.vmem %s7, 24
  %v654 = vld [vmem:[%s653] sm:$0xff]
  %v655 = vld [vmem:[%s653 + $0x8] sm:$0xff]
  %v656 = vld [vmem:[%s653 + $0x10] sm:$0xf]
  %v658 = vsel %vm575, %v556, 0
  %v661 = vsel %vm263, %v656, 0
  %663 = vmatprep.subr.mxu0 0.0
  %664 = vmatpush1.msra.mxu0 %v654
  %665 = vmatprep.subr.mxu0 0.0
  %666 = vmatpush1.msra.mxu0 %v655
  %667 = vmatprep.subr.mxu0 0.0
  %668 = vmatpush1.msra.mxu0 %v661
  %669 = vmatprep.subr.mxu0 0.0
  %670 = vmatpush1.msra.mxu0 0.0
  %671 = vmatprep.subr.mxu0 0.0
  %672 = vmatpush1.msra.mxu0 0.0
  %673 = vmatprep.subr.mxu0 0.0
  %674 = vmatpush1.msra.mxu0 0.0
  %675 = vmatprep.subr.mxu0 0.0
  %676 = vmatpush1.msra.mxu0 0.0
  %677 = vmatprep.subr.mxu0 0.0
  %678 = vmatpush1.msra.mxu0 0.0
  %679 = vmatprep.subr.mxu0 0.0
  %680 = vmatpush1.msra.mxu0 0.0
  %681 = vmatprep.subr.mxu0 0.0
  %682 = vmatpush1.msra.mxu0 0.0
  %683 = vmatprep.subr.mxu0 0.0
  %684 = vmatpush1.msra.mxu0 0.0
  %685 = vmatprep.subr.mxu0 0.0
  %686 = vmatpush1.msra.mxu0 0.0
  %687 = vmatprep.subr.mxu0 0.0
  %688 = vmatpush1.msra.mxu0 0.0
  %689 = vmatprep.subr.mxu0 0.0
  %690 = vmatpush1.msra.mxu0 0.0
  %691 = vmatprep.subr.mxu0 0.0
  %692 = vmatpush1.msra.mxu0 0.0
  %693 = vmatprep.subr.mxu0 0.0
  %694 = vmatpush1.msra.mxu0 0.0
  %695 = vmatprep.subr.mxu0 0.0
  %696 = vmatpush1.msra.mxu0 0.0
  %697 = vmatprep.subr.mxu0 0.0
  %698 = vmatpush1.msra.mxu0 0.0
  %699 = vmatprep.subr.mxu0 0.0
  %700 = vmatpush1.msra.mxu0 0.0
  %701 = vmatprep.subr.mxu0 0.0
  %702 = vmatpush1.msra.mxu0 0.0
  %703 = vmatprep.subr.mxu0 0.0
  %704 = vmatpush1.msra.mxu0 0.0
  %705 = vmatprep.subr.mxu0 0.0
  %706 = vmatpush1.msra.mxu0 0.0
  %707 = vmatprep.subr.mxu0 0.0
  %708 = vmatpush1.msra.mxu0 0.0
  %709 = vmatprep.subr.mxu0 0.0
  %710 = vmatpush1.msra.mxu0 0.0
  %711 = vmatprep.subr.mxu0 0.0
  %712 = vmatpush1.msra.mxu0 0.0
  %713 = vmatprep.subr.mxu0 0.0
  %714 = vmatpush1.msra.mxu0 0.0
  %715 = vmatprep.subr.mxu0 0.0
  %716 = vmatpush1.msra.mxu0 0.0
  %717 = vmatprep.subr.mxu0 0.0
  %718 = vmatpush1.msra.mxu0 0.0
  %719 = vmatprep.subr.mxu0 0.0
  %720 = vmatpush1.msra.mxu0 0.0
  %721 = vmatprep.subr.mxu0 0.0
  %722 = vmatpush1.msra.mxu0 0.0
  %723 = vmatprep.subr.mxu0 0.0
  %724 = vmatpush1.msra.mxu0 0.0
  %725 = vmatprep.subr.mxu0 0.0
  %726 = vmatpush1.msra.mxu0 0.0
  %727 = vmatprep.mubr.f32.mxu0 0.0
  %728 = vmatmul.mubr.f32.gmra.mrb[0].mxu0 %v658
  %v729 = vpop.f32.mrb[0].mxu0
  %v730 = vadd.f32 0.0, %v729
  %v731 = vpop.f32.mrb[0].mxu0
  %732 = vdwg.mxu0
  %v733 = vadd.f32 %v652, %v730
  %s734 = scalar_lea.vmem %s7, 48
  %v735 = vld [vmem:[%s734] sm:$0xff]
  %v736 = vld [vmem:[%s734 + $0x8] sm:$0xff]
  %v737 = vld [vmem:[%s734 + $0x10] sm:$0xf]
  %v739 = vsel %vm575, %v557, 0
  %v742 = vsel %vm263, %v737, 0
  %744 = vmatprep.subr.mxu0 0.0
  %745 = vmatpush1.msra.mxu0 %v735
  %746 = vmatprep.subr.mxu0 0.0
  %747 = vmatpush1.msra.mxu0 %v736
  %748 = vmatprep.subr.mxu0 0.0
  %749 = vmatpush1.msra.mxu0 %v742
  %750 = vmatprep.subr.mxu0 0.0
  %751 = vmatpush1.msra.mxu0 0.0
  %752 = vmatprep.subr.mxu0 0.0
  %753 = vmatpush1.msra.mxu0 0.0
  %754 = vmatprep.subr.mxu0 0.0
  %755 = vmatpush1.msra.mxu0 0.0
  %756 = vmatprep.subr.mxu0 0.0
  %757 = vmatpush1.msra.mxu0 0.0
  %758 = vmatprep.subr.mxu0 0.0
  %759 = vmatpush1.msra.mxu0 0.0
  %760 = vmatprep.subr.mxu0 0.0
  %761 = vmatpush1.msra.mxu0 0.0
  %762 = vmatprep.subr.mxu0 0.0
  %763 = vmatpush1.msra.mxu0 0.0
  %764 = vmatprep.subr.mxu0 0.0
  %765 = vmatpush1.msra.mxu0 0.0
  %766 = vmatprep.subr.mxu0 0.0
  %767 = vmatpush1.msra.mxu0 0.0
  %768 = vmatprep.subr.mxu0 0.0
  %769 = vmatpush1.msra.mxu0 0.0
  %770 = vmatprep.subr.mxu0 0.0
  %771 = vmatpush1.msra.mxu0 0.0
  %772 = vmatprep.subr.mxu0 0.0
  %773 = vmatpush1.msra.mxu0 0.0
  %774 = vmatprep.subr.mxu0 0.0
  %775 = vmatpush1.msra.mxu0 0.0
  %776 = vmatprep.subr.mxu0 0.0
  %777 = vmatpush1.msra.mxu0 0.0
  %778 = vmatprep.subr.mxu0 0.0
  %779 = vmatpush1.msra.mxu0 0.0
  %780 = vmatprep.subr.mxu0 0.0
  %781 = vmatpush1.msra.mxu0 0.0
  %782 = vmatprep.subr.mxu0 0.0
  %783 = vmatpush1.msra.mxu0 0.0
  %784 = vmatprep.subr.mxu0 0.0
  %785 = vmatpush1.msra.mxu0 0.0
  %786 = vmatprep.subr.mxu0 0.0
  %787 = vmatpush1.msra.mxu0 0.0
  %788 = vmatprep.subr.mxu0 0.0
  %789 = vmatpush1.msra.mxu0 0.0
  %790 = vmatprep.subr.mxu0 0.0
  %791 = vmatpush1.msra.mxu0 0.0
  %792 = vmatprep.subr.mxu0 0.0
  %793 = vmatpush1.msra.mxu0 0.0
  %794 = vmatprep.subr.mxu0 0.0
  %795 = vmatpush1.msra.mxu0 0.0
  %796 = vmatprep.subr.mxu0 0.0
  %797 = vmatpush1.msra.mxu0 0.0
  %798 = vmatprep.subr.mxu0 0.0
  %799 = vmatpush1.msra.mxu0 0.0
  %800 = vmatprep.subr.mxu0 0.0
  %801 = vmatpush1.msra.mxu0 0.0
  %802 = vmatprep.subr.mxu0 0.0
  %803 = vmatpush1.msra.mxu0 0.0
  %804 = vmatprep.subr.mxu0 0.0
  %805 = vmatpush1.msra.mxu0 0.0
  %806 = vmatprep.subr.mxu0 0.0
  %807 = vmatpush1.msra.mxu0 0.0
  %808 = vmatprep.mubr.f32.mxu0 0.0
  %809 = vmatmul.mubr.f32.gmra.mrb[0].mxu0 %v739
  %v810 = vpop.f32.mrb[0].mxu0
  %v811 = vadd.f32 0.0, %v810
  %v812 = vpop.f32.mrb[0].mxu0
  %813 = vdwg.mxu0
  %v814 = vadd.f32 %v733, %v811
  %s815 = scalar_lea.vmem %s7, 72
  %v816 = vld [vmem:[%s815] sm:$0xff]
  %v817 = vld [vmem:[%s815 + $0x8] sm:$0xff]
  %v818 = vld [vmem:[%s815 + $0x10] sm:$0xf]
  %v820 = vsel %vm575, %v558, 0
  %v823 = vsel %vm263, %v818, 0
  %825 = vmatprep.subr.mxu0 0.0
  %826 = vmatpush1.msra.mxu0 %v816
  %827 = vmatprep.subr.mxu0 0.0
  %828 = vmatpush1.msra.mxu0 %v817
  %829 = vmatprep.subr.mxu0 0.0
  %830 = vmatpush1.msra.mxu0 %v823
  %831 = vmatprep.subr.mxu0 0.0
  %832 = vmatpush1.msra.mxu0 0.0
  %833 = vmatprep.subr.mxu0 0.0
  %834 = vmatpush1.msra.mxu0 0.0
  %835 = vmatprep.subr.mxu0 0.0
  %836 = vmatpush1.msra.mxu0 0.0
  %837 = vmatprep.subr.mxu0 0.0
  %838 = vmatpush1.msra.mxu0 0.0
  %839 = vmatprep.subr.mxu0 0.0
  %840 = vmatpush1.msra.mxu0 0.0
  %841 = vmatprep.subr.mxu0 0.0
  %842 = vmatpush1.msra.mxu0 0.0
  %843 = vmatprep.subr.mxu0 0.0
  %844 = vmatpush1.msra.mxu0 0.0
  %845 = vmatprep.subr.mxu0 0.0
  %846 = vmatpush1.msra.mxu0 0.0
  %847 = vmatprep.subr.mxu0 0.0
  %848 = vmatpush1.msra.mxu0 0.0
  %849 = vmatprep.subr.mxu0 0.0
  %850 = vmatpush1.msra.mxu0 0.0
  %851 = vmatprep.subr.mxu0 0.0
  %852 = vmatpush1.msra.mxu0 0.0
  %853 = vmatprep.subr.mxu0 0.0
  %854 = vmatpush1.msra.mxu0 0.0
  %855 = vmatprep.subr.mxu0 0.0
  %856 = vmatpush1.msra.mxu0 0.0
  %857 = vmatprep.subr.mxu0 0.0
  %858 = vmatpush1.msra.mxu0 0.0
  %859 = vmatprep.subr.mxu0 0.0
  %860 = vmatpush1.msra.mxu0 0.0
  %861 = vmatprep.subr.mxu0 0.0
  %862 = vmatpush1.msra.mxu0 0.0
  %863 = vmatprep.subr.mxu0 0.0
  %864 = vmatpush1.msra.mxu0 0.0
  %865 = vmatprep.subr.mxu0 0.0
  %866 = vmatpush1.msra.mxu0 0.0
  %867 = vmatprep.subr.mxu0 0.0
  %868 = vmatpush1.msra.mxu0 0.0
  %869 = vmatprep.subr.mxu0 0.0
  %870 = vmatpush1.msra.mxu0 0.0
  %871 = vmatprep.subr.mxu0 0.0
  %872 = vmatpush1.msra.mxu0 0.0
  %873 = vmatprep.subr.mxu0 0.0
  %874 = vmatpush1.msra.mxu0 0.0
  %875 = vmatprep.subr.mxu0 0.0
  %876 = vmatpush1.msra.mxu0 0.0
  %877 = vmatprep.subr.mxu0 0.0
  %878 = vmatpush1.msra.mxu0 0.0
  %879 = vmatprep.subr.mxu0 0.0
  %880 = vmatpush1.msra.mxu0 0.0
  %881 = vmatprep.subr.mxu0 0.0
  %882 = vmatpush1.msra.mxu0 0.0
  %883 = vmatprep.subr.mxu0 0.0
  %884 = vmatpush1.msra.mxu0 0.0
  %885 = vmatprep.subr.mxu0 0.0
  %886 = vmatpush1.msra.mxu0 0.0
  %887 = vmatprep.subr.mxu0 0.0
  %888 = vmatpush1.msra.mxu0 0.0
  %889 = vmatprep.mubr.f32.mxu0 0.0
  %890 = vmatmul.mubr.f32.gmra.mrb[0].mxu0 %v820
  %v891 = vpop.f32.mrb[0].mxu0
  %v892 = vadd.f32 0.0, %v891
  %v893 = vpop.f32.mrb[0].mxu0
  %894 = vdwg.mxu0
  %v895 = vadd.f32 %v814, %v892
  %s896 = scalar_lea.vmem %s7, 96
  %v897 = vld [vmem:[%s896] sm:$0xff]
  %v898 = vld [vmem:[%s896 + $0x8] sm:$0xff]
  %v899 = vld [vmem:[%s896 + $0x10] sm:$0xf]
  %v901 = vsel %vm575, %v559, 0
  %v904 = vsel %vm263, %v899, 0
  %906 = vmatprep.subr.mxu0 0.0
  %907 = vmatpush1.msra.mxu0 %v897
  %908 = vmatprep.subr.mxu0 0.0
  %909 = vmatpush1.msra.mxu0 %v898
  %910 = vmatprep.subr.mxu0 0.0
  %911 = vmatpush1.msra.mxu0 %v904
  %912 = vmatprep.subr.mxu0 0.0
  %913 = vmatpush1.msra.mxu0 0.0
  %914 = vmatprep.subr.mxu0 0.0
  %915 = vmatpush1.msra.mxu0 0.0
  %916 = vmatprep.subr.mxu0 0.0
  %917 = vmatpush1.msra.mxu0 0.0
  %918 = vmatprep.subr.mxu0 0.0
  %919 = vmatpush1.msra.mxu0 0.0
  %920 = vmatprep.subr.mxu0 0.0
  %921 = vmatpush1.msra.mxu0 0.0
  %922 = vmatprep.subr.mxu0 0.0
  %923 = vmatpush1.msra.mxu0 0.0
  %924 = vmatprep.subr.mxu0 0.0
  %925 = vmatpush1.msra.mxu0 0.0
  %926 = vmatprep.subr.mxu0 0.0
  %927 = vmatpush1.msra.mxu0 0.0
  %928 = vmatprep.subr.mxu0 0.0
  %929 = vmatpush1.msra.mxu0 0.0
  %930 = vmatprep.subr.mxu0 0.0
  %931 = vmatpush1.msra.mxu0 0.0
  %932 = vmatprep.subr.mxu0 0.0
  %933 = vmatpush1.msra.mxu0 0.0
  %934 = vmatprep.subr.mxu0 0.0
  %935 = vmatpush1.msra.mxu0 0.0
  %936 = vmatprep.subr.mxu0 0.0
  %937 = vmatpush1.msra.mxu0 0.0
  %938 = vmatprep.subr.mxu0 0.0
  %939 = vmatpush1.msra.mxu0 0.0
  %940 = vmatprep.subr.mxu0 0.0
  %941 = vmatpush1.msra.mxu0 0.0
  %942 = vmatprep.subr.mxu0 0.0
  %943 = vmatpush1.msra.mxu0 0.0
  %944 = vmatprep.subr.mxu0 0.0
  %945 = vmatpush1.msra.mxu0 0.0
  %946 = vmatprep.subr.mxu0 0.0
  %947 = vmatpush1.msra.mxu0 0.0
  %948 = vmatprep.subr.mxu0 0.0
  %949 = vmatpush1.msra.mxu0 0.0
  %950 = vmatprep.subr.mxu0 0.0
  %951 = vmatpush1.msra.mxu0 0.0
  %952 = vmatprep.subr.mxu0 0.0
  %953 = vmatpush1.msra.mxu0 0.0
  %954 = vmatprep.subr.mxu0 0.0
  %955 = vmatpush1.msra.mxu0 0.0
  %956 = vmatprep.subr.mxu0 0.0
  %957 = vmatpush1.msra.mxu0 0.0
  %958 = vmatprep.subr.mxu0 0.0
  %959 = vmatpush1.msra.mxu0 0.0
  %960 = vmatprep.subr.mxu0 0.0
  %961 = vmatpush1.msra.mxu0 0.0
  %962 = vmatprep.subr.mxu0 0.0
  %963 = vmatpush1.msra.mxu0 0.0
  %964 = vmatprep.subr.mxu0 0.0
  %965 = vmatpush1.msra.mxu0 0.0
  %966 = vmatprep.subr.mxu0 0.0
  %967 = vmatpush1.msra.mxu0 0.0
  %968 = vmatprep.subr.mxu0 0.0
  %969 = vmatpush1.msra.mxu0 0.0
  %970 = vmatprep.mubr.f32.mxu0 0.0
  %971 = vmatmul.mubr.f32.gmra.mrb[0].mxu0 %v901
  %v972 = vpop.f32.mrb[0].mxu0
  %v973 = vadd.f32 0.0, %v972
  %v974 = vpop.f32.mrb[0].mxu0
  %975 = vdwg.mxu0
  %v976 = vadd.f32 %v895, %v973
  %s977 = scalar_lea.vmem %s7, 120
  %v978 = vld [vmem:[%s977] sm:$0xff]
  %v979 = vld [vmem:[%s977 + $0x8] sm:$0xff]
  %v980 = vld [vmem:[%s977 + $0x10] sm:$0xf]
  %v982 = vsel %vm575, %v560, 0
  %v985 = vsel %vm263, %v980, 0
  %987 = vmatprep.subr.mxu0 0.0
  %988 = vmatpush1.msra.mxu0 %v978
  %989 = vmatprep.subr.mxu0 0.0
  %990 = vmatpush1.msra.mxu0 %v979
  %991 = vmatprep.subr.mxu0 0.0
  %992 = vmatpush1.msra.mxu0 %v985
  %993 = vmatprep.subr.mxu0 0.0
  %994 = vmatpush1.msra.mxu0 0.0
  %995 = vmatprep.subr.mxu0 0.0
  %996 = vmatpush1.msra.mxu0 0.0
  %997 = vmatprep.subr.mxu0 0.0
  %998 = vmatpush1.msra.mxu0 0.0
  %999 = vmatprep.subr.mxu0 0.0
  %1000 = vmatpush1.msra.mxu0 0.0
  %1001 = vmatprep.subr.mxu0 0.0
  %1002 = vmatpush1.msra.mxu0 0.0
  %1003 = vmatprep.subr.mxu0 0.0
  %1004 = vmatpush1.msra.mxu0 0.0
  %1005 = vmatprep.subr.mxu0 0.0
  %1006 = vmatpush1.msra.mxu0 0.0
  %1007 = vmatprep.subr.mxu0 0.0
  %1008 = vmatpush1.msra.mxu0 0.0
  %1009 = vmatprep.subr.mxu0 0.0
  %1010 = vmatpush1.msra.mxu0 0.0
  %1011 = vmatprep.subr.mxu0 0.0
  %1012 = vmatpush1.msra.mxu0 0.0
  %1013 = vmatprep.subr.mxu0 0.0
  %1014 = vmatpush1.msra.mxu0 0.0
  %1015 = vmatprep.subr.mxu0 0.0
  %1016 = vmatpush1.msra.mxu0 0.0
  %1017 = vmatprep.subr.mxu0 0.0
  %1018 = vmatpush1.msra.mxu0 0.0
  %1019 = vmatprep.subr.mxu0 0.0
  %1020 = vmatpush1.msra.mxu0 0.0
  %1021 = vmatprep.subr.mxu0 0.0
  %1022 = vmatpush1.msra.mxu0 0.0
  %1023 = vmatprep.subr.mxu0 0.0
  %1024 = vmatpush1.msra.mxu0 0.0
  %1025 = vmatprep.subr.mxu0 0.0
  %1026 = vmatpush1.msra.mxu0 0.0
  %1027 = vmatprep.subr.mxu0 0.0
  %1028 = vmatpush1.msra.mxu0 0.0
  %1029 = vmatprep.subr.mxu0 0.0
  %1030 = vmatpush1.msra.mxu0 0.0
  %1031 = vmatprep.subr.mxu0 0.0
  %1032 = vmatpush1.msra.mxu0 0.0
  %1033 = vmatprep.subr.mxu0 0.0
  %1034 = vmatpush1.msra.mxu0 0.0
  %1035 = vmatprep.subr.mxu0 0.0
  %1036 = vmatpush1.msra.mxu0 0.0
  %1037 = vmatprep.subr.mxu0 0.0
  %1038 = vmatpush1.msra.mxu0 0.0
  %1039 = vmatprep.subr.mxu0 0.0
  %1040 = vmatpush1.msra.mxu0 0.0
  %1041 = vmatprep.subr.mxu0 0.0
  %1042 = vmatpush1.msra.mxu0 0.0
  %1043 = vmatprep.subr.mxu0 0.0
  %1044 = vmatpush1.msra.mxu0 0.0
  %1045 = vmatprep.subr.mxu0 0.0
  %1046 = vmatpush1.msra.mxu0 0.0
  %1047 = vmatprep.subr.mxu0 0.0
  %1048 = vmatpush1.msra.mxu0 0.0
  %1049 = vmatprep.subr.mxu0 0.0
  %1050 = vmatpush1.msra.mxu0 0.0
  %1051 = vmatprep.mubr.f32.mxu0 0.0
  %1052 = vmatmul.mubr.f32.gmra.mrb[0].mxu0 %v982
  %v1053 = vpop.f32.mrb[0].mxu0
  %v1054 = vadd.f32 0.0, %v1053
  %v1055 = vpop.f32.mrb[0].mxu0
  %1056 = vdwg.mxu0
  %v1057 = vadd.f32 %v976, %v1054
  %s1058 = scalar_lea.vmem %s7, 144
  %v1059 = vld [vmem:[%s1058] sm:$0xff]
  %v1060 = vld [vmem:[%s1058 + $0x8] sm:$0xff]
  %v1061 = vld [vmem:[%s1058 + $0x10] sm:$0xf]
  %v1063 = vsel %vm575, %v561, 0
  %v1066 = vsel %vm263, %v1061, 0
  %1068 = vmatprep.subr.mxu0 0.0
  %1069 = vmatpush1.msra.mxu0 %v1059
  %1070 = vmatprep.subr.mxu0 0.0
  %1071 = vmatpush1.msra.mxu0 %v1060
  %1072 = vmatprep.subr.mxu0 0.0
  %1073 = vmatpush1.msra.mxu0 %v1066
  %1074 = vmatprep.subr.mxu0 0.0
  %1075 = vmatpush1.msra.mxu0 0.0
  %1076 = vmatprep.subr.mxu0 0.0
  %1077 = vmatpush1.msra.mxu0 0.0
  %1078 = vmatprep.subr.mxu0 0.0
  %1079 = vmatpush1.msra.mxu0 0.0
  %1080 = vmatprep.subr.mxu0 0.0
  %1081 = vmatpush1.msra.mxu0 0.0
  %1082 = vmatprep.subr.mxu0 0.0
  %1083 = vmatpush1.msra.mxu0 0.0
  %1084 = vmatprep.subr.mxu0 0.0
  %1085 = vmatpush1.msra.mxu0 0.0
  %1086 = vmatprep.subr.mxu0 0.0
  %1087 = vmatpush1.msra.mxu0 0.0
  %1088 = vmatprep.subr.mxu0 0.0
  %1089 = vmatpush1.msra.mxu0 0.0
  %1090 = vmatprep.subr.mxu0 0.0
  %1091 = vmatpush1.msra.mxu0 0.0
  %1092 = vmatprep.subr.mxu0 0.0
  %1093 = vmatpush1.msra.mxu0 0.0
  %1094 = vmatprep.subr.mxu0 0.0
  %1095 = vmatpush1.msra.mxu0 0.0
  %1096 = vmatprep.subr.mxu0 0.0
  %1097 = vmatpush1.msra.mxu0 0.0
  %1098 = vmatprep.subr.mxu0 0.0
  %1099 = vmatpush1.msra.mxu0 0.0
  %1100 = vmatprep.subr.mxu0 0.0
  %1101 = vmatpush1.msra.mxu0 0.0
  %1102 = vmatprep.subr.mxu0 0.0
  %1103 = vmatpush1.msra.mxu0 0.0
  %1104 = vmatprep.subr.mxu0 0.0
  %1105 = vmatpush1.msra.mxu0 0.0
  %1106 = vmatprep.subr.mxu0 0.0
  %1107 = vmatpush1.msra.mxu0 0.0
  %1108 = vmatprep.subr.mxu0 0.0
  %1109 = vmatpush1.msra.mxu0 0.0
  %1110 = vmatprep.subr.mxu0 0.0
  %1111 = vmatpush1.msra.mxu0 0.0
  %1112 = vmatprep.subr.mxu0 0.0
  %1113 = vmatpush1.msra.mxu0 0.0
  %1114 = vmatprep.subr.mxu0 0.0
  %1115 = vmatpush1.msra.mxu0 0.0
  %1116 = vmatprep.subr.mxu0 0.0
  %1117 = vmatpush1.msra.mxu0 0.0
  %1118 = vmatprep.subr.mxu0 0.0
  %1119 = vmatpush1.msra.mxu0 0.0
  %1120 = vmatprep.subr.mxu0 0.0
  %1121 = vmatpush1.msra.mxu0 0.0
  %1122 = vmatprep.subr.mxu0 0.0
  %1123 = vmatpush1.msra.mxu0 0.0
  %1124 = vmatprep.subr.mxu0 0.0
  %1125 = vmatpush1.msra.mxu0 0.0
  %1126 = vmatprep.subr.mxu0 0.0
  %1127 = vmatpush1.msra.mxu0 0.0
  %1128 = vmatprep.subr.mxu0 0.0
  %1129 = vmatpush1.msra.mxu0 0.0
  %1130 = vmatprep.subr.mxu0 0.0
  %1131 = vmatpush1.msra.mxu0 0.0
  %1132 = vmatprep.mubr.f32.mxu0 0.0
  %1133 = vmatmul.mubr.f32.gmra.mrb[0].mxu0 %v1063
  %v1134 = vpop.f32.mrb[0].mxu0
  %v1135 = vadd.f32 0.0, %v1134
  %v1136 = vpop.f32.mrb[0].mxu0
  %1137 = vdwg.mxu0
  %v1138 = vadd.f32 %v1057, %v1135
  %s1139 = scalar_lea.vmem %s7, 168
  %v1140 = vld [vmem:[%s1139] sm:$0xff]
  %v1141 = vld [vmem:[%s1139 + $0x8] sm:$0xff]
  %v1142 = vld [vmem:[%s1139 + $0x10] sm:$0xf]
  %v1144 = vsel %vm575, %v562, 0
  %v1147 = vsel %vm263, %v1142, 0
  %1149 = vmatprep.subr.mxu0 0.0
  %1150 = vmatpush1.msra.mxu0 %v1140
  %1151 = vmatprep.subr.mxu0 0.0
  %1152 = vmatpush1.msra.mxu0 %v1141
  %1153 = vmatprep.subr.mxu0 0.0
  %1154 = vmatpush1.msra.mxu0 %v1147
  %1155 = vmatprep.subr.mxu0 0.0
  %1156 = vmatpush1.msra.mxu0 0.0
  %1157 = vmatprep.subr.mxu0 0.0
  %1158 = vmatpush1.msra.mxu0 0.0
  %1159 = vmatprep.subr.mxu0 0.0
  %1160 = vmatpush1.msra.mxu0 0.0
  %1161 = vmatprep.subr.mxu0 0.0
  %1162 = vmatpush1.msra.mxu0 0.0
  %1163 = vmatprep.subr.mxu0 0.0
  %1164 = vmatpush1.msra.mxu0 0.0
  %1165 = vmatprep.subr.mxu0 0.0
  %1166 = vmatpush1.msra.mxu0 0.0
  %1167 = vmatprep.subr.mxu0 0.0
  %1168 = vmatpush1.msra.mxu0 0.0
  %1169 = vmatprep.subr.mxu0 0.0
  %1170 = vmatpush1.msra.mxu0 0.0
  %1171 = vmatprep.subr.mxu0 0.0
  %1172 = vmatpush1.msra.mxu0 0.0
  %1173 = vmatprep.subr.mxu0 0.0
  %1174 = vmatpush1.msra.mxu0 0.0
  %1175 = vmatprep.subr.mxu0 0.0
  %1176 = vmatpush1.msra.mxu0 0.0
  %1177 = vmatprep.subr.mxu0 0.0
  %1178 = vmatpush1.msra.mxu0 0.0
  %1179 = vmatprep.subr.mxu0 0.0
  %1180 = vmatpush1.msra.mxu0 0.0
  %1181 = vmatprep.subr.mxu0 0.0
  %1182 = vmatpush1.msra.mxu0 0.0
  %1183 = vmatprep.subr.mxu0 0.0
  %1184 = vmatpush1.msra.mxu0 0.0
  %1185 = vmatprep.subr.mxu0 0.0
  %1186 = vmatpush1.msra.mxu0 0.0
  %1187 = vmatprep.subr.mxu0 0.0
  %1188 = vmatpush1.msra.mxu0 0.0
  %1189 = vmatprep.subr.mxu0 0.0
  %1190 = vmatpush1.msra.mxu0 0.0
  %1191 = vmatprep.subr.mxu0 0.0
  %1192 = vmatpush1.msra.mxu0 0.0
  %1193 = vmatprep.subr.mxu0 0.0
  %1194 = vmatpush1.msra.mxu0 0.0
  %1195 = vmatprep.subr.mxu0 0.0
  %1196 = vmatpush1.msra.mxu0 0.0
  %1197 = vmatprep.subr.mxu0 0.0
  %1198 = vmatpush1.msra.mxu0 0.0
  %1199 = vmatprep.subr.mxu0 0.0
  %1200 = vmatpush1.msra.mxu0 0.0
  %1201 = vmatprep.subr.mxu0 0.0
  %1202 = vmatpush1.msra.mxu0 0.0
  %1203 = vmatprep.subr.mxu0 0.0
  %1204 = vmatpush1.msra.mxu0 0.0
  %1205 = vmatprep.subr.mxu0 0.0
  %1206 = vmatpush1.msra.mxu0 0.0
  %1207 = vmatprep.subr.mxu0 0.0
  %1208 = vmatpush1.msra.mxu0 0.0
  %1209 = vmatprep.subr.mxu0 0.0
  %1210 = vmatpush1.msra.mxu0 0.0
  %1211 = vmatprep.subr.mxu0 0.0
  %1212 = vmatpush1.msra.mxu0 0.0
  %1213 = vmatprep.mubr.f32.mxu0 0.0
  %1214 = vmatmul.mubr.f32.gmra.mrb[0].mxu0 %v1144
  %v1215 = vpop.f32.mrb[0].mxu0
  %v1216 = vadd.f32 0.0, %v1215
  %v1217 = vpop.f32.mrb[0].mxu0
  %1218 = vdwg.mxu0
  %v1219 = vadd.f32 %v1138, %v1216
  %s1220 = scalar_lea.vmem %s7, 192
  %v1221 = vld [vmem:[%s1220] sm:$0xff]
  %v1222 = vld [vmem:[%s1220 + $0x8] sm:$0xff]
  %v1223 = vld [vmem:[%s1220 + $0x10] sm:$0xf]
  %v1225 = vsel %vm575, %v563, 0
  %v1228 = vsel %vm263, %v1223, 0
  %1230 = vmatprep.subr.mxu0 0.0
  %1231 = vmatpush1.msra.mxu0 %v1221
  %1232 = vmatprep.subr.mxu0 0.0
  %1233 = vmatpush1.msra.mxu0 %v1222
  %1234 = vmatprep.subr.mxu0 0.0
  %1235 = vmatpush1.msra.mxu0 %v1228
  %1236 = vmatprep.subr.mxu0 0.0
  %1237 = vmatpush1.msra.mxu0 0.0
  %1238 = vmatprep.subr.mxu0 0.0
  %1239 = vmatpush1.msra.mxu0 0.0
  %1240 = vmatprep.subr.mxu0 0.0
  %1241 = vmatpush1.msra.mxu0 0.0
  %1242 = vmatprep.subr.mxu0 0.0
  %1243 = vmatpush1.msra.mxu0 0.0
  %1244 = vmatprep.subr.mxu0 0.0
  %1245 = vmatpush1.msra.mxu0 0.0
  %1246 = vmatprep.subr.mxu0 0.0
  %1247 = vmatpush1.msra.mxu0 0.0
  %1248 = vmatprep.subr.mxu0 0.0
  %1249 = vmatpush1.msra.mxu0 0.0
  %1250 = vmatprep.subr.mxu0 0.0
  %1251 = vmatpush1.msra.mxu0 0.0
  %1252 = vmatprep.subr.mxu0 0.0
  %1253 = vmatpush1.msra.mxu0 0.0
  %1254 = vmatprep.subr.mxu0 0.0
  %1255 = vmatpush1.msra.mxu0 0.0
  %1256 = vmatprep.subr.mxu0 0.0
  %1257 = vmatpush1.msra.mxu0 0.0
  %1258 = vmatprep.subr.mxu0 0.0
  %1259 = vmatpush1.msra.mxu0 0.0
  %1260 = vmatprep.subr.mxu0 0.0
  %1261 = vmatpush1.msra.mxu0 0.0
  %1262 = vmatprep.subr.mxu0 0.0
  %1263 = vmatpush1.msra.mxu0 0.0
  %1264 = vmatprep.subr.mxu0 0.0
  %1265 = vmatpush1.msra.mxu0 0.0
  %1266 = vmatprep.subr.mxu0 0.0
  %1267 = vmatpush1.msra.mxu0 0.0
  %1268 = vmatprep.subr.mxu0 0.0
  %1269 = vmatpush1.msra.mxu0 0.0
  %1270 = vmatprep.subr.mxu0 0.0
  %1271 = vmatpush1.msra.mxu0 0.0
  %1272 = vmatprep.subr.mxu0 0.0
  %1273 = vmatpush1.msra.mxu0 0.0
  %1274 = vmatprep.subr.mxu0 0.0
  %1275 = vmatpush1.msra.mxu0 0.0
  %1276 = vmatprep.subr.mxu0 0.0
  %1277 = vmatpush1.msra.mxu0 0.0
  %1278 = vmatprep.subr.mxu0 0.0
  %1279 = vmatpush1.msra.mxu0 0.0
  %1280 = vmatprep.subr.mxu0 0.0
  %1281 = vmatpush1.msra.mxu0 0.0
  %1282 = vmatprep.subr.mxu0 0.0
  %1283 = vmatpush1.msra.mxu0 0.0
  %1284 = vmatprep.subr.mxu0 0.0
  %1285 = vmatpush1.msra.mxu0 0.0
  %1286 = vmatprep.subr.mxu0 0.0
  %1287 = vmatpush1.msra.mxu0 0.0
  %1288 = vmatprep.subr.mxu0 0.0
  %1289 = vmatpush1.msra.mxu0 0.0
  %1290 = vmatprep.subr.mxu0 0.0
  %1291 = vmatpush1.msra.mxu0 0.0
  %1292 = vmatprep.subr.mxu0 0.0
  %1293 = vmatpush1.msra.mxu0 0.0
  %1294 = vmatprep.mubr.f32.mxu0 0.0
  %1295 = vmatmul.mubr.f32.gmra.mrb[0].mxu0 %v1225
  %v1296 = vpop.f32.mrb[0].mxu0
  %v1297 = vadd.f32 0.0, %v1296
  %v1298 = vpop.f32.mrb[0].mxu0
  %1299 = vdwg.mxu0
  %v1300 = vadd.f32 %v1219, %v1297
  %s1301 = scalar_lea.vmem %s7, 216
  %v1302 = vld [vmem:[%s1301] sm:$0xff]
  %v1303 = vld [vmem:[%s1301 + $0x8] sm:$0xff]
  %v1304 = vld [vmem:[%s1301 + $0x10] sm:$0xf]
  %v1306 = vsel %vm575, %v564, 0
  %v1309 = vsel %vm263, %v1304, 0
  %1311 = vmatprep.subr.mxu0 0.0
  %1312 = vmatpush1.msra.mxu0 %v1302
  %1313 = vmatprep.subr.mxu0 0.0
  %1314 = vmatpush1.msra.mxu0 %v1303
  %1315 = vmatprep.subr.mxu0 0.0
  %1316 = vmatpush1.msra.mxu0 %v1309
  %1317 = vmatprep.subr.mxu0 0.0
  %1318 = vmatpush1.msra.mxu0 0.0
  %1319 = vmatprep.subr.mxu0 0.0
  %1320 = vmatpush1.msra.mxu0 0.0
  %1321 = vmatprep.subr.mxu0 0.0
  %1322 = vmatpush1.msra.mxu0 0.0
  %1323 = vmatprep.subr.mxu0 0.0
  %1324 = vmatpush1.msra.mxu0 0.0
  %1325 = vmatprep.subr.mxu0 0.0
  %1326 = vmatpush1.msra.mxu0 0.0
  %1327 = vmatprep.subr.mxu0 0.0
  %1328 = vmatpush1.msra.mxu0 0.0
  %1329 = vmatprep.subr.mxu0 0.0
  %1330 = vmatpush1.msra.mxu0 0.0
  %1331 = vmatprep.subr.mxu0 0.0
  %1332 = vmatpush1.msra.mxu0 0.0
  %1333 = vmatprep.subr.mxu0 0.0
  %1334 = vmatpush1.msra.mxu0 0.0
  %1335 = vmatprep.subr.mxu0 0.0
  %1336 = vmatpush1.msra.mxu0 0.0
  %1337 = vmatprep.subr.mxu0 0.0
  %1338 = vmatpush1.msra.mxu0 0.0
  %1339 = vmatprep.subr.mxu0 0.0
  %1340 = vmatpush1.msra.mxu0 0.0
  %1341 = vmatprep.subr.mxu0 0.0
  %1342 = vmatpush1.msra.mxu0 0.0
  %1343 = vmatprep.subr.mxu0 0.0
  %1344 = vmatpush1.msra.mxu0 0.0
  %1345 = vmatprep.subr.mxu0 0.0
  %1346 = vmatpush1.msra.mxu0 0.0
  %1347 = vmatprep.subr.mxu0 0.0
  %1348 = vmatpush1.msra.mxu0 0.0
  %1349 = vmatprep.subr.mxu0 0.0
  %1350 = vmatpush1.msra.mxu0 0.0
  %1351 = vmatprep.subr.mxu0 0.0
  %1352 = vmatpush1.msra.mxu0 0.0
  %1353 = vmatprep.subr.mxu0 0.0
  %1354 = vmatpush1.msra.mxu0 0.0
  %1355 = vmatprep.subr.mxu0 0.0
  %1356 = vmatpush1.msra.mxu0 0.0
  %1357 = vmatprep.subr.mxu0 0.0
  %1358 = vmatpush1.msra.mxu0 0.0
  %1359 = vmatprep.subr.mxu0 0.0
  %1360 = vmatpush1.msra.mxu0 0.0
  %1361 = vmatprep.subr.mxu0 0.0
  %1362 = vmatpush1.msra.mxu0 0.0
  %1363 = vmatprep.subr.mxu0 0.0
  %1364 = vmatpush1.msra.mxu0 0.0
  %1365 = vmatprep.subr.mxu0 0.0
  %1366 = vmatpush1.msra.mxu0 0.0
  %1367 = vmatprep.subr.mxu0 0.0
  %1368 = vmatpush1.msra.mxu0 0.0
  %1369 = vmatprep.subr.mxu0 0.0
  %1370 = vmatpush1.msra.mxu0 0.0
  %1371 = vmatprep.subr.mxu0 0.0
  %1372 = vmatpush1.msra.mxu0 0.0
  %1373 = vmatprep.subr.mxu0 0.0
  %1374 = vmatpush1.msra.mxu0 0.0
  %1375 = vmatprep.mubr.f32.mxu0 0.0
  %1376 = vmatmul.mubr.f32.gmra.mrb[0].mxu0 %v1306
  %v1377 = vpop.f32.mrb[0].mxu0
  %v1378 = vadd.f32 0.0, %v1377
  %v1379 = vpop.f32.mrb[0].mxu0
  %1380 = vdwg.mxu0
  %v1381 = vadd.f32 %v1300, %v1378
  %1382 = vst [vmem:[%s9] sm:$0xff] %v1381
  // Predicated region
  $region38: #{match_predictor_forward.1} parent=0 // pred_check
    _
  $region39: #{match_predictor_forward.1} parent=0 // pred_check_branch
    %1384 = sbr.rel (0) target = $region41
  $region40: #{match_predictor_forward.1} parent=0 // pred_region
    _
  $region41: #{match_predictor_forward.1} parent=0 // pred_fallthru
    _
  // Predicated region
  $region42: #{match_predictor_forward.1} parent=0 // pred_check
    _
  $region43: #{match_predictor_forward.1} parent=0 // pred_check_branch
    %1386 = sbr.rel (0) target = $region45
  $region44: #{match_predictor_forward.1} parent=0 // pred_region
    _
  $region45: #{match_predictor_forward.1} parent=0 // pred_fallthru
    _

</llo_original>
